<compile_context>
chip_gen: v5e
topology: v5e:2x2
jax: 0.10.0
libtpu: 0.0.40
codegen_flags: <defaults>
</compile_context>

<pallas_src>
import jax
import jax.numpy as jnp
from jax.experimental import pallas as pl
from jax.experimental.pallas import tpu as pltpu

IN_DIM = 20          # latent size
HID_DIM = 400        # fc1 out
OUT_DIM = 784        # fc2 out

K_PAD = 128          # padded contraction dim for fc1 (holds x + the "1" column)
H_PAD = 512          # padded hidden dim (4 x 128)
O_PAD = 896          # padded output dim (7 x 128)
ONES_COL = IN_DIM    # column of x_pad that is constant 1.0 (folds b1 into w1)


def decoder_kernel(x_ref, w1_ref, w2_ref, b2_ref, o_ref):
    # fc1 (+ folded b1) on the MXU, f32 accumulation; ReLU in f32 on the VPU.
    h = jnp.dot(x_ref[...], w1_ref[...], preferred_element_type=jnp.float32)
    h = jnp.maximum(h, 0.0)
    # fc2 on the MXU (bf16 operands, f32 acc), then f32 bias + sigmoid (EUP).
    y = jnp.dot(h.astype(jnp.bfloat16), w2_ref[...],
                preferred_element_type=jnp.float32)
    y = y + b2_ref[...]                       # b2 is [1, O_PAD] -> broadcasts over batch
    o_ref[...] = jax.nn.sigmoid(y)


def pad_params(w1, b1, w2, b2):
    """Zero-pad params to lane-aligned shapes; fold b1 into an extra row of w1.

    w1: [20, 400], b1: [400], w2: [400, 784], b2: [784]   ([in, out] layout)
    """
    w1p = jnp.zeros((K_PAD, H_PAD), jnp.bfloat16)
    w1p = w1p.at[:IN_DIM, :HID_DIM].set(w1.astype(jnp.bfloat16))
    w1p = w1p.at[ONES_COL, :HID_DIM].set(b1.astype(jnp.bfloat16))  # bias row

    w2p = jnp.zeros((H_PAD, O_PAD), jnp.bfloat16)
    w2p = w2p.at[:HID_DIM, :OUT_DIM].set(w2.astype(jnp.bfloat16))

    b2p = jnp.zeros((1, O_PAD), jnp.float32)
    b2p = b2p.at[0, :OUT_DIM].set(b2.astype(jnp.float32))
    return w1p, w2p, b2p


def decoder_forward(x, w1p, w2p, b2p, *, tb=128):
    """x: [B, 20] f32.  Returns [B, 784] f32."""
    B = x.shape[0]
    # Batch tile: full 128-row MXU tiles for large batches; round small batches
    # up to the f32 sublane multiple (8) so the BlockSpec stays (8,128)-aligned.
    tb_eff = tb if B >= tb else max(8, ((B + 7) // 8) * 8)
    b_pad = ((B + tb_eff - 1) // tb_eff) * tb_eff

    # Pad x: [B,20] -> [b_pad, 128] with a constant-1 column at ONES_COL.
    xp = jnp.zeros((b_pad, K_PAD), jnp.float32)
    xp = xp.at[:B, :IN_DIM].set(x)
    xp = xp.at[:, ONES_COL].set(1.0)
    xp = xp.astype(jnp.bfloat16)

    grid = (b_pad // tb_eff,)
    out_padded = pl.pallas_call(
        decoder_kernel,
        out_shape=jax.ShapeDtypeStruct((b_pad, O_PAD), jnp.float32),
        grid_spec=pltpu.PrefetchScalarGridSpec(
            num_scalar_prefetch=0,
            grid=grid,
            in_specs=[
                pl.BlockSpec((tb_eff, K_PAD), lambda i: (i, 0)),   # x: batch-blocked
                pl.BlockSpec((K_PAD, H_PAD), lambda i: (0, 0)),    # w1: resident
                pl.BlockSpec((H_PAD, O_PAD), lambda i: (0, 0)),    # w2: resident
                pl.BlockSpec((1, O_PAD), lambda i: (0, 0)),        # b2: resident
            ],
            out_specs=pl.BlockSpec((tb_eff, O_PAD), lambda i: (i, 0)),
        ),
        compiler_params=pltpu.CompilerParams(
            dimension_semantics=("parallel",),   # v7x: shard batch across 2 TCs
        ),
        cost_estimate=pl.CostEstimate(
            flops=2 * b_pad * (K_PAD * H_PAD + H_PAD * O_PAD),
            transcendentals=b_pad * O_PAD,
            bytes_accessed=(xp.size * 2 + w1p.size * 2 + w2p.size * 2
                            + b2p.size * 4 + b_pad * O_PAD * 4),
        ),
    )(xp, w1p, w2p, b2p)

    # Slice away batch padding and the padded output columns (sigmoid(0)=0.5 there).
    return out_padded[:B, :OUT_DIM]


def init_params(key):
    """Deterministic init mimicking PyTorch nn.Linear default U[-1/sqrt(fan_in), 1/sqrt(fan_in)].

    Weights stored as [in_features, out_features] (transpose of nn.Linear.weight),
    so the forward computes x @ W + b directly.
    """
    k1, k2, k3, k4 = jax.random.split(key, 4)
    lim1 = 1.0 / jnp.sqrt(jnp.float32(IN_DIM))
    lim2 = 1.0 / jnp.sqrt(jnp.float32(HID_DIM))
    w1 = jax.random.uniform(k1, (IN_DIM, HID_DIM), jnp.float32, -lim1, lim1)
    b1 = jax.random.uniform(k2, (HID_DIM,), jnp.float32, -lim1, lim1)
    w2 = jax.random.uniform(k3, (HID_DIM, OUT_DIM), jnp.float32, -lim2, lim2)
    b2 = jax.random.uniform(k4, (OUT_DIM,), jnp.float32, -lim2, lim2)
    return w1, b1, w2, b2


if __name__ == "__main__":
    key = jax.random.PRNGKey(0)
    kx, kp = jax.random.split(key)

    B = 2
    x = jax.random.normal(kx, (B, IN_DIM), jnp.float32)   # latent vectors
    w1, b1, w2, b2 = init_params(kp)

    w1p, w2p, b2p = pad_params(w1, b1, w2, b2)            # one-time padding/cast
    out = decoder_forward(x, w1p, w2p, b2p)
    out = jax.block_until_ready(out)

    # Reference in full f32 (kernel uses bf16 matmul operands -> loose tolerance).
    ref = jax.nn.sigmoid(jnp.maximum(x @ w1 + b1, 0.0) @ w2 + b2)
    assert out.shape == (B, OUT_DIM), out.shape
    err = float(jnp.max(jnp.abs(out - ref)))
    assert jnp.allclose(out, ref, atol=2e-2), err

    print("KERNEL_OK")
</pallas_src>

<mosaic_0001>
module attributes {stable_mosaic.version = 11 : i64} {
  func.func @decoder_kernel(%arg0: i32, %arg1: memref<8x128xbf16, #tpu.memory_space<vmem>>, %arg2: memref<128x512xbf16, #tpu.memory_space<vmem>>, %arg3: memref<512x896xbf16, #tpu.memory_space<vmem>>, %arg4: memref<1x896xf32, #tpu.memory_space<vmem>>, %arg5: memref<8x896xf32, #tpu.memory_space<vmem>>) attributes {dimension_semantics = [#tpu.dimension_semantics<parallel>], iteration_bounds = array<i64: 1>, scalar_prefetch = 0 : i64, scratch_operands = 0 : i64, tpu.core_type = #tpu.core_type<tc>, window_params = [{transform_indices = @transform_0, window_bounds = array<i64: 8, 128>}, {pipeline_mode = #tpu.pipeline_mode<synchronous>, transform_indices = @transform_1, window_bounds = array<i64: 128, 512>}, {pipeline_mode = #tpu.pipeline_mode<synchronous>, transform_indices = @transform_2, window_bounds = array<i64: 512, 896>}, {pipeline_mode = #tpu.pipeline_mode<synchronous>, transform_indices = @transform_3, window_bounds = array<i64: 1, 896>}, {transform_indices = @transform_4, window_bounds = array<i64: 8, 896>}]} {
    %c0 = arith.constant 0 : index
    %c0_0 = arith.constant 0 : index
    %0 = vector.load %arg1[%c0, %c0_0] : memref<8x128xbf16, #tpu.memory_space<vmem>>, vector<8x128xbf16>
    %c0_1 = arith.constant 0 : index
    %c0_2 = arith.constant 0 : index
    %1 = vector.load %arg2[%c0_1, %c0_2] : memref<128x512xbf16, #tpu.memory_space<vmem>>, vector<128x512xbf16>
    %cst = arith.constant dense<0.000000e+00> : vector<8x512xf32>
    %2 = tpu.matmul %0, %1, %cst {dimension_numbers = #tpu.dot_dimension_numbers<[1], [0], [0], [1], [0, 0, 1, 1], [], []>} : vector<8x128xbf16>, vector<128x512xbf16>, vector<8x512xf32> -> vector<8x512xf32>
    %cst_3 = arith.constant 0.000000e+00 : f32
    %3 = vector.broadcast %cst_3 : f32 to vector<8x512xf32>
    %4 = arith.maximumf %2, %3 : vector<8x512xf32>
    %5 = arith.truncf %4 : vector<8x512xf32> to vector<8x512xbf16>
    %c0_4 = arith.constant 0 : index
    %c0_5 = arith.constant 0 : index
    %6 = vector.load %arg3[%c0_4, %c0_5] : memref<512x896xbf16, #tpu.memory_space<vmem>>, vector<512x896xbf16>
    %cst_6 = arith.constant dense<0.000000e+00> : vector<8x896xf32>
    %7 = tpu.matmul %5, %6, %cst_6 {dimension_numbers = #tpu.dot_dimension_numbers<[1], [0], [0], [1], [0, 0, 1, 1], [], []>} : vector<8x512xbf16>, vector<512x896xbf16>, vector<8x896xf32> -> vector<8x896xf32>
    %c0_7 = arith.constant 0 : index
    %c0_8 = arith.constant 0 : index
    %8 = vector.load %arg4[%c0_7, %c0_8] : memref<1x896xf32, #tpu.memory_space<vmem>>, vector<1x896xf32>
    %9 = vector.broadcast %8 : vector<1x896xf32> to vector<8x896xf32>
    %10 = arith.addf %7, %9 : vector<8x896xf32>
    %11 = arith.negf %10 : vector<8x896xf32>
    %12 = math.exp %11 : vector<8x896xf32>
    %cst_9 = arith.constant 1.000000e+00 : f32
    %13 = vector.broadcast %cst_9 : f32 to vector<8x896xf32>
    %14 = arith.addf %13, %12 : vector<8x896xf32>
    %15 = arith.divf %13, %14 : vector<8x896xf32>
    %c0_10 = arith.constant 0 : index
    %c0_11 = arith.constant 0 : index
    %16 = vector.load %arg5[%c0_10, %c0_11] : memref<8x896xf32, #tpu.memory_space<vmem>>, vector<8x896xf32>
    tpu.vector_store %arg5[%c0_10, %c0_11], %15 {strides = array<i32>} : memref<8x896xf32, #tpu.memory_space<vmem>>, vector<8x896xf32>,
    return
  }
  func.func @transform_0(%arg0: i32) -> (i32, i32) {
    %c0_i32 = arith.constant 0 : i32
    %c0_i32_0 = arith.constant 0 : i32
    return %arg0, %c0_i32 : i32, i32
  }
  func.func @transform_1(%arg0: i32) -> (i32, i32) {
    %c0_i32 = arith.constant 0 : i32
    %c0_i32_0 = arith.constant 0 : i32
    %c0_i32_1 = arith.constant 0 : i32
    return %c0_i32, %c0_i32_0 : i32, i32
  }
  func.func @transform_2(%arg0: i32) -> (i32, i32) {
    %c0_i32 = arith.constant 0 : i32
    %c0_i32_0 = arith.constant 0 : i32
    %c0_i32_1 = arith.constant 0 : i32
    return %c0_i32, %c0_i32_0 : i32, i32
  }
  func.func @transform_3(%arg0: i32) -> (i32, i32) {
    %c0_i32 = arith.constant 0 : i32
    %c0_i32_0 = arith.constant 0 : i32
    %c0_i32_1 = arith.constant 0 : i32
    return %c0_i32, %c0_i32_0 : i32, i32
  }
  func.func @transform_4(%arg0: i32) -> (i32, i32) {
    %c0_i32 = arith.constant 0 : i32
    %c0_i32_0 = arith.constant 0 : i32
    return %arg0, %c0_i32 : i32, i32
  }
}

</mosaic_0001>

<llo_original>
// kernel: tpu_custom_call.1
$region0: #{tpu_custom_call.1}
  #allocation0 [shape = 'u32[]', space=smem, size = 0x4, offset = 0x4, fixed_abs, tag = 'smem constant byte address 0x4 - core index']
  #allocation1 [shape = 'u32[72,128]{1,0:T(1,128)}', space=vmem, size = 0x9000, scoped, tag = 'internal scratch']
  %s0 = inlined_call_operand.hbm [shape: bf16[8,128], index: 0, kind: input, shape index: {}]
  %s1 = inlined_call_operand.hbm [shape: bf16[128,512], index: 1, kind: input, shape index: {}]
  %s2 = inlined_call_operand.hbm [shape: bf16[512,896], index: 2, kind: input, shape index: {}]
  %s3 = inlined_call_operand.hbm [shape: f32[1,896], index: 3, kind: input, shape index: {}]
  %s4 = inlined_call_operand.hbm [shape: f32[8,896], index: 4, kind: output, shape index: {}]
  %s5 = sld [smem:[#allocation0]]
  $region42: #{tpu_custom_call.1} parent=0
    _
  %s7 = ssub.s32 1, %s5
  %s8 = scalar_select 0, %s7, %s5
  $region1: #{tpu_custom_call.1} parent=0
    #allocation2 [shape = 'u8[2048]{0}', space=vmem, size = 0x800, scoped, tag = 'input window, operand 0, single buffered']
    #allocation3 [shape = 's32[1]{0}', space=sflag, size = 0x4, scoped, tag = 'scoped memory for tpu_custom_call.1']
    #allocation4 [shape = 's32[1]{0}', space=sflag, size = 0x4, scoped, tag = 'scoped memory for tpu_custom_call.1']
    #allocation5 [shape = 'u8[131072]{0}', space=vmem, size = 0x20000, scoped, tag = 'input window, operand 1, single buffered']
    #allocation6 [shape = 's32[1]{0}', space=sflag, size = 0x4, scoped, tag = 'scoped memory for tpu_custom_call.1']
    #allocation7 [shape = 'u8[917504]{0}', space=vmem, size = 0xe0000, scoped, tag = 'input window, operand 2, single buffered']
    #allocation8 [shape = 'u8[3584]{0}', space=vmem, size = 0x1000, scoped, tag = 'input window, operand 3, single buffered']
    #allocation9 [shape = 's32[1]{0}', space=sflag, size = 0x4, scoped, tag = 'scoped memory for tpu_custom_call.1']
    #allocation10 [shape = 'u8[28672]{0}', space=vmem, size = 0x7000, scoped, tag = 'output window, operand 0, single buffered']
    %9 = vsyncpa [#allocation3], 0
    %10 = vsyncpa [#allocation6], 0
    %11 = vsyncpa [#allocation9], 0
    %12 = vsyncpa [#allocation4], 0
    // Predicated region
    $region2: #{tpu_custom_call.1} parent=1 // pred_check
      _
    $region3: #{tpu_custom_call.1} parent=1 // pred_check_branch
      %14 = sbr.rel (0) target = $region5
    $region4: #{tpu_custom_call.1} parent=1 // pred_region
      %16 = vsyncadd [#allocation3], 0
      %s18 = sshll.u32 %s0, 4
      %s19 = int_to_ptr.hbm [resolvable:$true] %s18
      %s20 = sshll.u32 [#allocation2], 4
      %s21 = int_to_ptr.vmem [resolvable:$true] %s20
      %23 = dma.hbm_to_vmem [thread:$0]  %s19, 64, %s21, [#allocation3]
    $region5: #{tpu_custom_call.1} parent=1 // pred_fallthru
      _
    // Predicated region
    $region6: #{tpu_custom_call.1} parent=1 // pred_check
      _
    $region7: #{tpu_custom_call.1} parent=1 // pred_check_branch
      %25 = sbr.rel (0) target = $region9
    $region8: #{tpu_custom_call.1} parent=1 // pred_region
      %27 = vsyncadd [#allocation6], 0
      %s28 = sshll.u32 %s1, 4
      %s29 = int_to_ptr.hbm [resolvable:$true] %s28
      %s30 = sshll.u32 [#allocation5], 4
      %s31 = int_to_ptr.vmem [resolvable:$true] %s30
      %36 = dma.hbm_to_vmem [thread:$0]  %s29, 4096, %s31, [#allocation6], 256, 256, 16
    $region9: #{tpu_custom_call.1} parent=1 // pred_fallthru
      _
    // Predicated region
    $region10: #{tpu_custom_call.1} parent=1 // pred_check
      _
    $region11: #{tpu_custom_call.1} parent=1 // pred_check_branch
      %38 = sbr.rel (0) target = $region13
    $region12: #{tpu_custom_call.1} parent=1 // pred_region
      %40 = vsyncadd [#allocation6], 0
      %s41 = sshll.u32 %s2, 4
      %s42 = int_to_ptr.hbm [resolvable:$true] %s41
      %s43 = sshll.u32 [#allocation7], 4
      %s44 = int_to_ptr.vmem [resolvable:$true] %s43
      %49 = dma.hbm_to_vmem [thread:$0]  %s42, 28672, %s44, [#allocation6], 448, 448, 28
    $region13: #{tpu_custom_call.1} parent=1 // pred_fallthru
      _
    // Predicated region
    $region14: #{tpu_custom_call.1} parent=1 // pred_check
      _
    $region15: #{tpu_custom_call.1} parent=1 // pred_check_branch
      %51 = sbr.rel (0) target = $region17
    $region16: #{tpu_custom_call.1} parent=1 // pred_region
      %53 = vsyncadd [#allocation9], 0
      %s55 = sshll.u32 %s3, 4
      %s56 = int_to_ptr.hbm [resolvable:$true] %s55
      %s57 = sshll.u32 [#allocation8], 4
      %s58 = int_to_ptr.vmem [resolvable:$true] %s57
      %60 = dma.hbm_to_vmem [thread:$0]  %s56, 112, %s58, [#allocation9]
    $region17: #{tpu_custom_call.1} parent=1 // pred_fallthru
      _
    // Predicated region
    $region18: #{tpu_custom_call.1} parent=1 // pred_check
      _
    $region19: #{tpu_custom_call.1} parent=1 // pred_check_branch
      %62 = sbr.rel (0) target = $region21
    $region20: #{tpu_custom_call.1} parent=1 // pred_region
      %64 = dma.done [#allocation3], 64
    $region21: #{tpu_custom_call.1} parent=1 // pred_fallthru
      _
    // Predicated region
    $region22: #{tpu_custom_call.1} parent=1 // pred_check
      _
    $region23: #{tpu_custom_call.1} parent=1 // pred_check_branch
      %66 = sbr.rel (0) target = $region25
    $region24: #{tpu_custom_call.1} parent=1 // pred_region
      %68 = dma.done [#allocation6], 4096
    $region25: #{tpu_custom_call.1} parent=1 // pred_fallthru
      _
    // Predicated region
    $region26: #{tpu_custom_call.1} parent=1 // pred_check
      _
    $region27: #{tpu_custom_call.1} parent=1 // pred_check_branch
      %70 = sbr.rel (0) target = $region29
    $region28: #{tpu_custom_call.1} parent=1 // pred_region
      %72 = dma.done [#allocation6], 28672
    $region29: #{tpu_custom_call.1} parent=1 // pred_fallthru
      _
    // Predicated region
    $region30: #{tpu_custom_call.1} parent=1 // pred_check
      _
    $region31: #{tpu_custom_call.1} parent=1 // pred_check_branch
      %74 = sbr.rel (0) target = $region33
    $region32: #{tpu_custom_call.1} parent=1 // pred_region
      %76 = dma.done [#allocation9], 112
    $region33: #{tpu_custom_call.1} parent=1 // pred_fallthru
      _
    %v77 = vld [vmem:[#allocation2] sm:$0xf]
    %v78 = vld [vmem:[#allocation5] sm:$0xff]
    %v79 = vld [vmem:[#allocation5 + $0x8] sm:$0xff]
    %v80 = vld [vmem:[#allocation5 + $0x10] sm:$0xff]
    %v81 = vld [vmem:[#allocation5 + $0x18] sm:$0xff]
    %v82 = vld [vmem:[#allocation5 + $0x20] sm:$0xff]
    %v83 = vld [vmem:[#allocation5 + $0x28] sm:$0xff]
    %v84 = vld [vmem:[#allocation5 + $0x30] sm:$0xff]
    %v85 = vld [vmem:[#allocation5 + $0x38] sm:$0xff]
    %v86 = vld [vmem:[#allocation5 + $0x40] sm:$0xff]
    %v87 = vld [vmem:[#allocation5 + $0x48] sm:$0xff]
    %v88 = vld [vmem:[#allocation5 + $0x50] sm:$0xff]
    %v89 = vld [vmem:[#allocation5 + $0x58] sm:$0xff]
    %v90 = vld [vmem:[#allocation5 + $0x60] sm:$0xff]
    %v91 = vld [vmem:[#allocation5 + $0x68] sm:$0xff]
    %v92 = vld [vmem:[#allocation5 + $0x70] sm:$0xff]
    %v93 = vld [vmem:[#allocation5 + $0x78] sm:$0xff]
    %v94 = vld [vmem:[#allocation5 + $0x80] sm:$0xff]
    %v95 = vld [vmem:[#allocation5 + $0x88] sm:$0xff]
    %v96 = vld [vmem:[#allocation5 + $0x90] sm:$0xff]
    %v97 = vld [vmem:[#allocation5 + $0x98] sm:$0xff]
    %v98 = vld [vmem:[#allocation5 + $0xa0] sm:$0xff]
    %v99 = vld [vmem:[#allocation5 + $0xa8] sm:$0xff]
    %v100 = vld [vmem:[#allocation5 + $0xb0] sm:$0xff]
    %v101 = vld [vmem:[#allocation5 + $0xb8] sm:$0xff]
    %v102 = vld [vmem:[#allocation5 + $0xc0] sm:$0xff]
    %v103 = vld [vmem:[#allocation5 + $0xc8] sm:$0xff]
    %v104 = vld [vmem:[#allocation5 + $0xd0] sm:$0xff]
    %v105 = vld [vmem:[#allocation5 + $0xd8] sm:$0xff]
    %v106 = vld [vmem:[#allocation5 + $0xe0] sm:$0xff]
    %v107 = vld [vmem:[#allocation5 + $0xe8] sm:$0xff]
    %v108 = vld [vmem:[#allocation5 + $0xf0] sm:$0xff]
    %v109 = vld [vmem:[#allocation5 + $0xf8] sm:$0xff]
    %v142 = vunpack.c.l.b16 %v78
    %v143 = vunpack.c.h.b16 %v78
    %v144 = vunpack.c.l.b16 %v79
    %v145 = vunpack.c.h.b16 %v79
    %v146 = vunpack.c.l.b16 %v80
    %v147 = vunpack.c.h.b16 %v80
    %v148 = vunpack.c.l.b16 %v81
    %v149 = vunpack.c.h.b16 %v81
    %v150 = vunpack.c.l.b16 %v82
    %v151 = vunpack.c.h.b16 %v82
    %v152 = vunpack.c.l.b16 %v83
    %v153 = vunpack.c.h.b16 %v83
    %v154 = vunpack.c.l.b16 %v84
    %v155 = vunpack.c.h.b16 %v84
    %v156 = vunpack.c.l.b16 %v85
    %v157 = vunpack.c.h.b16 %v85
    %v158 = vunpack.c.l.b16 %v86
    %v159 = vunpack.c.h.b16 %v86
    %v160 = vunpack.c.l.b16 %v87
    %v161 = vunpack.c.h.b16 %v87
    %v162 = vunpack.c.l.b16 %v88
    %v163 = vunpack.c.h.b16 %v88
    %v164 = vunpack.c.l.b16 %v89
    %v165 = vunpack.c.h.b16 %v89
    %v166 = vunpack.c.l.b16 %v90
    %v167 = vunpack.c.h.b16 %v90
    %v168 = vunpack.c.l.b16 %v91
    %v169 = vunpack.c.h.b16 %v91
    %v170 = vunpack.c.l.b16 %v92
    %v171 = vunpack.c.h.b16 %v92
    %v172 = vunpack.c.l.b16 %v93
    %v173 = vunpack.c.h.b16 %v93
    %v174 = vunpack.c.l.b16 %v94
    %v175 = vunpack.c.h.b16 %v94
    %v176 = vunpack.c.l.b16 %v95
    %v177 = vunpack.c.h.b16 %v95
    %v178 = vunpack.c.l.b16 %v96
    %v179 = vunpack.c.h.b16 %v96
    %v180 = vunpack.c.l.b16 %v97
    %v181 = vunpack.c.h.b16 %v97
    %v182 = vunpack.c.l.b16 %v98
    %v183 = vunpack.c.h.b16 %v98
    %v184 = vunpack.c.l.b16 %v99
    %v185 = vunpack.c.h.b16 %v99
    %v186 = vunpack.c.l.b16 %v100
    %v187 = vunpack.c.h.b16 %v100
    %v188 = vunpack.c.l.b16 %v101
    %v189 = vunpack.c.h.b16 %v101
    %v190 = vunpack.c.l.b16 %v102
    %v191 = vunpack.c.h.b16 %v102
    %v192 = vunpack.c.l.b16 %v103
    %v193 = vunpack.c.h.b16 %v103
    %v194 = vunpack.c.l.b16 %v104
    %v195 = vunpack.c.h.b16 %v104
    %v196 = vunpack.c.l.b16 %v105
    %v197 = vunpack.c.h.b16 %v105
    %v198 = vunpack.c.l.b16 %v106
    %v199 = vunpack.c.h.b16 %v106
    %v200 = vunpack.c.l.b16 %v107
    %v201 = vunpack.c.h.b16 %v107
    %v202 = vunpack.c.l.b16 %v108
    %v203 = vunpack.c.h.b16 %v108
    %v204 = vunpack.c.l.b16 %v109
    %v205 = vunpack.c.h.b16 %v109
    %v206 = vpack.c.b16 %v146, %v142
    %v207 = vpack.c.b16 %v147, %v143
    %v208 = vpack.c.b16 %v148, %v144
    %v209 = vpack.c.b16 %v149, %v145
    %v210 = vpack.c.b16 %v154, %v150
    %v211 = vpack.c.b16 %v155, %v151
    %v212 = vpack.c.b16 %v156, %v152
    %v213 = vpack.c.b16 %v157, %v153
    %v214 = vpack.c.b16 %v162, %v158
    %v215 = vpack.c.b16 %v163, %v159
    %v216 = vpack.c.b16 %v164, %v160
    %v217 = vpack.c.b16 %v165, %v161
    %v218 = vpack.c.b16 %v170, %v166
    %v219 = vpack.c.b16 %v171, %v167
    %v220 = vpack.c.b16 %v172, %v168
    %v221 = vpack.c.b16 %v173, %v169
    %v222 = vpack.c.b16 %v178, %v174
    %v223 = vpack.c.b16 %v179, %v175
    %v224 = vpack.c.b16 %v180, %v176
    %v225 = vpack.c.b16 %v181, %v177
    %v226 = vpack.c.b16 %v186, %v182
    %v227 = vpack.c.b16 %v187, %v183
    %v228 = vpack.c.b16 %v188, %v184
    %v229 = vpack.c.b16 %v189, %v185
    %v230 = vpack.c.b16 %v194, %v190
    %v231 = vpack.c.b16 %v195, %v191
    %v232 = vpack.c.b16 %v196, %v192
    %v233 = vpack.c.b16 %v197, %v193
    %v234 = vpack.c.b16 %v202, %v198
    %v235 = vpack.c.b16 %v203, %v199
    %v236 = vpack.c.b16 %v204, %v200
    %v237 = vpack.c.b16 %v205, %v201
    %270 = vmatpush.bf16.msra.mxu0 %v234
    %271 = vmatpush.bf16.msra.mxu0 %v230
    %272 = vmatpush.bf16.msra.mxu0 %v226
    %273 = vmatpush.bf16.msra.mxu0 %v222
    %274 = vmatpush.bf16.msra.mxu0 %v218
    %275 = vmatpush.bf16.msra.mxu0 %v214
    %276 = vmatpush.bf16.msra.mxu0 %v210
    %277 = vmatpush.bf16.msra.mxu0 %v206
    %278 = vmatmul.bf16.gmra.mxu0 %v77
    %v279 = vpop.f32.mrf.mxu0
    %v280 = vadd.f32 0.0, %v279
    %v281 = vpop.f32.mrf.mxu0
    %282 = vdwg.mxu0
    %283 = vmatpush.bf16.msra.mxu0 %v235
    %284 = vmatpush.bf16.msra.mxu0 %v231
    %285 = vmatpush.bf16.msra.mxu0 %v227
    %286 = vmatpush.bf16.msra.mxu0 %v223
    %287 = vmatpush.bf16.msra.mxu0 %v219
    %288 = vmatpush.bf16.msra.mxu0 %v215
    %289 = vmatpush.bf16.msra.mxu0 %v211
    %290 = vmatpush.bf16.msra.mxu0 %v207
    %291 = vmatmul.bf16.gmra.mxu0 %v77
    %v292 = vpop.f32.mrf.mxu0
    %v293 = vadd.f32 0.0, %v292
    %v294 = vpop.f32.mrf.mxu0
    %295 = vdwg.mxu0
    %296 = vmatpush.bf16.msra.mxu0 %v236
    %297 = vmatpush.bf16.msra.mxu0 %v232
    %298 = vmatpush.bf16.msra.mxu0 %v228
    %299 = vmatpush.bf16.msra.mxu0 %v224
    %300 = vmatpush.bf16.msra.mxu0 %v220
    %301 = vmatpush.bf16.msra.mxu0 %v216
    %302 = vmatpush.bf16.msra.mxu0 %v212
    %303 = vmatpush.bf16.msra.mxu0 %v208
    %304 = vmatmul.bf16.gmra.mxu0 %v77
    %v305 = vpop.f32.mrf.mxu0
    %v306 = vadd.f32 0.0, %v305
    %v307 = vpop.f32.mrf.mxu0
    %308 = vdwg.mxu0
    %309 = vmatpush.bf16.msra.mxu0 %v237
    %310 = vmatpush.bf16.msra.mxu0 %v233
    %311 = vmatpush.bf16.msra.mxu0 %v229
    %312 = vmatpush.bf16.msra.mxu0 %v225
    %313 = vmatpush.bf16.msra.mxu0 %v221
    %314 = vmatpush.bf16.msra.mxu0 %v217
    %315 = vmatpush.bf16.msra.mxu0 %v213
    %316 = vmatpush.bf16.msra.mxu0 %v209
    %317 = vmatmul.bf16.gmra.mxu0 %v77
    %v318 = vpop.f32.mrf.mxu0
    %v319 = vadd.f32 0.0, %v318
    %v320 = vpop.f32.mrf.mxu0
    %321 = vdwg.mxu0
    %v322 = vmax.f32 %v280, 0.0
    %v323 = vmax.f32 %v293, 0.0
    %v324 = vmax.f32 %v306, 0.0
    %v325 = vmax.f32 %v319, 0.0
    %v326 = vpack.c.bf16 %v322, %v322
    %v327 = vpack.c.bf16 %v323, %v323
    %v328 = vpack.c.bf16 %v324, %v324
    %v329 = vpack.c.bf16 %v325, %v325
    %v330 = vld [vmem:[#allocation7] sm:$0xff]
    %v331 = vld [vmem:[#allocation7 + $0x8] sm:$0xff]
    %v332 = vld [vmem:[#allocation7 + $0x10] sm:$0xff]
    %v333 = vld [vmem:[#allocation7 + $0x18] sm:$0xf]
    %v334 = vld [vmem:[#allocation7 + $0x1c] sm:$0xff]
    %v335 = vld [vmem:[#allocation7 + $0x24] sm:$0xff]
    %v336 = vld [vmem:[#allocation7 + $0x2c] sm:$0xff]
    %v337 = vld [vmem:[#allocation7 + $0x34] sm:$0xf]
    %v338 = vld [vmem:[#allocation7 + $0x38] sm:$0xff]
    %v339 = vld [vmem:[#allocation7 + $0x40] sm:$0xff]
    %v340 = vld [vmem:[#allocation7 + $0x48] sm:$0xff]
    %v341 = vld [vmem:[#allocation7 + $0x50] sm:$0xf]
    %v342 = vld [vmem:[#allocation7 + $0x54] sm:$0xff]
    %v343 = vld [vmem:[#allocation7 + $0x5c] sm:$0xff]
    %v344 = vld [vmem:[#allocation7 + $0x64] sm:$0xff]
    %v345 = vld [vmem:[#allocation7 + $0x6c] sm:$0xf]
    %v346 = vld [vmem:[#allocation7 + $0x70] sm:$0xff]
    %v347 = vld [vmem:[#allocation7 + $0x78] sm:$0xff]
    %v348 = vld [vmem:[#allocation7 + $0x80] sm:$0xff]
    %v349 = vld [vmem:[#allocation7 + $0x88] sm:$0xf]
    %v350 = vld [vmem:[#allocation7 + $0x8c] sm:$0xff]
    %v351 = vld [vmem:[#allocation7 + $0x94] sm:$0xff]
    %v352 = vld [vmem:[#allocation7 + $0x9c] sm:$0xff]
    %v353 = vld [vmem:[#allocation7 + $0xa4] sm:$0xf]
    %v354 = vld [vmem:[#allocation7 + $0xa8] sm:$0xff]
    %v355 = vld [vmem:[#allocation7 + $0xb0] sm:$0xff]
    %v356 = vld [vmem:[#allocation7 + $0xb8] sm:$0xff]
    %v357 = vld [vmem:[#allocation7 + $0xc0] sm:$0xf]
    %v358 = vld [vmem:[#allocation7 + $0xc4] sm:$0xff]
    %v359 = vld [vmem:[#allocation7 + $0xcc] sm:$0xff]
    %v360 = vld [vmem:[#allocation7 + $0xd4] sm:$0xff]
    %v361 = vld [vmem:[#allocation7 + $0xdc] sm:$0xf]
    %v362 = vld [vmem:[#allocation7 + $0xe0] sm:$0xff]
    %v363 = vld [vmem:[#allocation7 + $0xe8] sm:$0xff]
    %v364 = vld [vmem:[#allocation7 + $0xf0] sm:$0xff]
    %v365 = vld [vmem:[#allocation7 + $0xf8] sm:$0xf]
    %v366 = vld [vmem:[#allocation7 + $0xfc] sm:$0xff]
    %v367 = vld [vmem:[#allocation7 + $0x104] sm:$0xff]
    %v368 = vld [vmem:[#allocation7 + $0x10c] sm:$0xff]
    %v369 = vld [vmem:[#allocation7 + $0x114] sm:$0xf]
    %v370 = vld [vmem:[#allocation7 + $0x118] sm:$0xff]
    %v371 = vld [vmem:[#allocation7 + $0x120] sm:$0xff]
    %v372 = vld [vmem:[#allocation7 + $0x128] sm:$0xff]
    %v373 = vld [vmem:[#allocation7 + $0x130] sm:$0xf]
    %v374 = vld [vmem:[#allocation7 + $0x134] sm:$0xff]
    %v375 = vld [vmem:[#allocation7 + $0x13c] sm:$0xff]
    %v376 = vld [vmem:[#allocation7 + $0x144] sm:$0xff]
    %v377 = vld [vmem:[#allocation7 + $0x14c] sm:$0xf]
    %v378 = vld [vmem:[#allocation7 + $0x150] sm:$0xff]
    %v379 = vld [vmem:[#allocation7 + $0x158] sm:$0xff]
    %v380 = vld [vmem:[#allocation7 + $0x160] sm:$0xff]
    %v381 = vld [vmem:[#allocation7 + $0x168] sm:$0xf]
    %v382 = vld [vmem:[#allocation7 + $0x16c] sm:$0xff]
    %v383 = vld [vmem:[#allocation7 + $0x174] sm:$0xff]
    %v384 = vld [vmem:[#allocation7 + $0x17c] sm:$0xff]
    %v385 = vld [vmem:[#allocation7 + $0x184] sm:$0xf]
    %v386 = vld [vmem:[#allocation7 + $0x188] sm:$0xff]
    %v387 = vld [vmem:[#allocation7 + $0x190] sm:$0xff]
    %v388 = vld [vmem:[#allocation7 + $0x198] sm:$0xff]
    %v389 = vld [vmem:[#allocation7 + $0x1a0] sm:$0xf]
    %v390 = vld [vmem:[#allocation7 + $0x1a4] sm:$0xff]
    %v391 = vld [vmem:[#allocation7 + $0x1ac] sm:$0xff]
    %v392 = vld [vmem:[#allocation7 + $0x1b4] sm:$0xff]
    %v393 = vld [vmem:[#allocation7 + $0x1bc] sm:$0xf]
    %v394 = vld [vmem:[#allocation7 + $0x1c0] sm:$0xff]
    %v395 = vld [vmem:[#allocation7 + $0x1c8] sm:$0xff]
    %v396 = vld [vmem:[#allocation7 + $0x1d0] sm:$0xff]
    %v397 = vld [vmem:[#allocation7 + $0x1d8] sm:$0xf]
    %v398 = vld [vmem:[#allocation7 + $0x1dc] sm:$0xff]
    %v399 = vld [vmem:[#allocation7 + $0x1e4] sm:$0xff]
    %v400 = vld [vmem:[#allocation7 + $0x1ec] sm:$0xff]
    %v401 = vld [vmem:[#allocation7 + $0x1f4] sm:$0xf]
    %v402 = vld [vmem:[#allocation7 + $0x1f8] sm:$0xff]
    %v403 = vld [vmem:[#allocation7 + $0x200] sm:$0xff]
    %v404 = vld [vmem:[#allocation7 + $0x208] sm:$0xff]
    %v405 = vld [vmem:[#allocation7 + $0x210] sm:$0xf]
    %v406 = vld [vmem:[#allocation7 + $0x214] sm:$0xff]
    %v407 = vld [vmem:[#allocation7 + $0x21c] sm:$0xff]
    %v408 = vld [vmem:[#allocation7 + $0x224] sm:$0xff]
    %v409 = vld [vmem:[#allocation7 + $0x22c] sm:$0xf]
    %v410 = vld [vmem:[#allocation7 + $0x230] sm:$0xff]
    %v411 = vld [vmem:[#allocation7 + $0x238] sm:$0xff]
    %v412 = vld [vmem:[#allocation7 + $0x240] sm:$0xff]
    %v413 = vld [vmem:[#allocation7 + $0x248] sm:$0xf]
    %v414 = vld [vmem:[#allocation7 + $0x24c] sm:$0xff]
    %v415 = vld [vmem:[#allocation7 + $0x254] sm:$0xff]
    %v416 = vld [vmem:[#allocation7 + $0x25c] sm:$0xff]
    %v417 = vld [vmem:[#allocation7 + $0x264] sm:$0xf]
    %v418 = vld [vmem:[#allocation7 + $0x268] sm:$0xff]
    %v419 = vld [vmem:[#allocation7 + $0x270] sm:$0xff]
    %v420 = vld [vmem:[#allocation7 + $0x278] sm:$0xff]
    %v421 = vld [vmem:[#allocation7 + $0x280] sm:$0xf]
    %v422 = vld [vmem:[#allocation7 + $0x284] sm:$0xff]
    %v423 = vld [vmem:[#allocation7 + $0x28c] sm:$0xff]
    %v424 = vld [vmem:[#allocation7 + $0x294] sm:$0xff]
    %v425 = vld [vmem:[#allocation7 + $0x29c] sm:$0xf]
    %v426 = vld [vmem:[#allocation7 + $0x2a0] sm:$0xff]
    %v427 = vld [vmem:[#allocation7 + $0x2a8] sm:$0xff]
    %v428 = vld [vmem:[#allocation7 + $0x2b0] sm:$0xff]
    %v429 = vld [vmem:[#allocation7 + $0x2b8] sm:$0xf]
    %v430 = vld [vmem:[#allocation7 + $0x2bc] sm:$0xff]
    %v431 = vld [vmem:[#allocation7 + $0x2c4] sm:$0xff]
    %v432 = vld [vmem:[#allocation7 + $0x2cc] sm:$0xff]
    %v433 = vld [vmem:[#allocation7 + $0x2d4] sm:$0xf]
    %v434 = vld [vmem:[#allocation7 + $0x2d8] sm:$0xff]
    %v435 = vld [vmem:[#allocation7 + $0x2e0] sm:$0xff]
    %v436 = vld [vmem:[#allocation7 + $0x2e8] sm:$0xff]
    %v437 = vld [vmem:[#allocation7 + $0x2f0] sm:$0xf]
    %v438 = vld [vmem:[#allocation7 + $0x2f4] sm:$0xff]
    %v439 = vld [vmem:[#allocation7 + $0x2fc] sm:$0xff]
    %v440 = vld [vmem:[#allocation7 + $0x304] sm:$0xff]
    %v441 = vld [vmem:[#allocation7 + $0x30c] sm:$0xf]
    %v442 = vld [vmem:[#allocation7 + $0x310] sm:$0xff]
    %v443 = vld [vmem:[#allocation7 + $0x318] sm:$0xff]
    %v444 = vld [vmem:[#allocation7 + $0x320] sm:$0xff]
    %v445 = vld [vmem:[#allocation7 + $0x328] sm:$0xf]
    %v446 = vld [vmem:[#allocation7 + $0x32c] sm:$0xff]
    %v447 = vld [vmem:[#allocation7 + $0x334] sm:$0xff]
    %v448 = vld [vmem:[#allocation7 + $0x33c] sm:$0xff]
    %v449 = vld [vmem:[#allocation7 + $0x344] sm:$0xf]
    %v450 = vld [vmem:[#allocation7 + $0x348] sm:$0xff]
    %v451 = vld [vmem:[#allocation7 + $0x350] sm:$0xff]
    %v452 = vld [vmem:[#allocation7 + $0x358] sm:$0xff]
    %v453 = vld [vmem:[#allocation7 + $0x360] sm:$0xf]
    %v454 = vld [vmem:[#allocation7 + $0x364] sm:$0xff]
    %v455 = vld [vmem:[#allocation7 + $0x36c] sm:$0xff]
    %v456 = vld [vmem:[#allocation7 + $0x374] sm:$0xff]
    %v457 = vld [vmem:[#allocation7 + $0x37c] sm:$0xf]
    %v458 = vld [vmem:[#allocation7 + $0x380] sm:$0xff]
    %v459 = vld [vmem:[#allocation7 + $0x388] sm:$0xff]
    %v460 = vld [vmem:[#allocation7 + $0x390] sm:$0xff]
    %v461 = vld [vmem:[#allocation7 + $0x398] sm:$0xf]
    %v462 = vld [vmem:[#allocation7 + $0x39c] sm:$0xff]
    %v463 = vld [vmem:[#allocation7 + $0x3a4] sm:$0xff]
    %v464 = vld [vmem:[#allocation7 + $0x3ac] sm:$0xff]
    %v465 = vld [vmem:[#allocation7 + $0x3b4] sm:$0xf]
    %v466 = vld [vmem:[#allocation7 + $0x3b8] sm:$0xff]
    %v467 = vld [vmem:[#allocation7 + $0x3c0] sm:$0xff]
    %v468 = vld [vmem:[#allocation7 + $0x3c8] sm:$0xff]
    %v469 = vld [vmem:[#allocation7 + $0x3d0] sm:$0xf]
    %v470 = vld [vmem:[#allocation7 + $0x3d4] sm:$0xff]
    %v471 = vld [vmem:[#allocation7 + $0x3dc] sm:$0xff]
    %v472 = vld [vmem:[#allocation7 + $0x3e4] sm:$0xff]
    %v473 = vld [vmem:[#allocation7 + $0x3ec] sm:$0xf]
    %v474 = vld [vmem:[#allocation7 + $0x3f0] sm:$0xff]
    %v475 = vld [vmem:[#allocation7 + $0x3f8] sm:$0xff]
    %v476 = vld [vmem:[#allocation7 + $0x400] sm:$0xff]
    %v477 = vld [vmem:[#allocation7 + $0x408] sm:$0xf]
    %v478 = vld [vmem:[#allocation7 + $0x40c] sm:$0xff]
    %v479 = vld [vmem:[#allocation7 + $0x414] sm:$0xff]
    %v480 = vld [vmem:[#allocation7 + $0x41c] sm:$0xff]
    %v481 = vld [vmem:[#allocation7 + $0x424] sm:$0xf]
    %v482 = vld [vmem:[#allocation7 + $0x428] sm:$0xff]
    %v483 = vld [vmem:[#allocation7 + $0x430] sm:$0xff]
    %v484 = vld [vmem:[#allocation7 + $0x438] sm:$0xff]
    %v485 = vld [vmem:[#allocation7 + $0x440] sm:$0xf]
    %v486 = vld [vmem:[#allocation7 + $0x444] sm:$0xff]
    %v487 = vld [vmem:[#allocation7 + $0x44c] sm:$0xff]
    %v488 = vld [vmem:[#allocation7 + $0x454] sm:$0xff]
    %v489 = vld [vmem:[#allocation7 + $0x45c] sm:$0xf]
    %v490 = vld [vmem:[#allocation7 + $0x460] sm:$0xff]
    %v491 = vld [vmem:[#allocation7 + $0x468] sm:$0xff]
    %v492 = vld [vmem:[#allocation7 + $0x470] sm:$0xff]
    %v493 = vld [vmem:[#allocation7 + $0x478] sm:$0xf]
    %v494 = vld [vmem:[#allocation7 + $0x47c] sm:$0xff]
    %v495 = vld [vmem:[#allocation7 + $0x484] sm:$0xff]
    %v496 = vld [vmem:[#allocation7 + $0x48c] sm:$0xff]
    %v497 = vld [vmem:[#allocation7 + $0x494] sm:$0xf]
    %v498 = vld [vmem:[#allocation7 + $0x498] sm:$0xff]
    %v499 = vld [vmem:[#allocation7 + $0x4a0] sm:$0xff]
    %v500 = vld [vmem:[#allocation7 + $0x4a8] sm:$0xff]
    %v501 = vld [vmem:[#allocation7 + $0x4b0] sm:$0xf]
    %v502 = vld [vmem:[#allocation7 + $0x4b4] sm:$0xff]
    %v503 = vld [vmem:[#allocation7 + $0x4bc] sm:$0xff]
    %v504 = vld [vmem:[#allocation7 + $0x4c4] sm:$0xff]
    %v505 = vld [vmem:[#allocation7 + $0x4cc] sm:$0xf]
    %v506 = vld [vmem:[#allocation7 + $0x4d0] sm:$0xff]
    %v507 = vld [vmem:[#allocation7 + $0x4d8] sm:$0xff]
    %v508 = vld [vmem:[#allocation7 + $0x4e0] sm:$0xff]
    %v509 = vld [vmem:[#allocation7 + $0x4e8] sm:$0xf]
    %v510 = vld [vmem:[#allocation7 + $0x4ec] sm:$0xff]
    %v511 = vld [vmem:[#allocation7 + $0x4f4] sm:$0xff]
    %v512 = vld [vmem:[#allocation7 + $0x4fc] sm:$0xff]
    %v513 = vld [vmem:[#allocation7 + $0x504] sm:$0xf]
    %v514 = vld [vmem:[#allocation7 + $0x508] sm:$0xff]
    %v515 = vld [vmem:[#allocation7 + $0x510] sm:$0xff]
    %v516 = vld [vmem:[#allocation7 + $0x518] sm:$0xff]
    %v517 = vld [vmem:[#allocation7 + $0x520] sm:$0xf]
    %v518 = vld [vmem:[#allocation7 + $0x524] sm:$0xff]
    %v519 = vld [vmem:[#allocation7 + $0x52c] sm:$0xff]
    %v520 = vld [vmem:[#allocation7 + $0x534] sm:$0xff]
    %v521 = vld [vmem:[#allocation7 + $0x53c] sm:$0xf]
    %v522 = vld [vmem:[#allocation7 + $0x540] sm:$0xff]
    %v523 = vld [vmem:[#allocation7 + $0x548] sm:$0xff]
    %v524 = vld [vmem:[#allocation7 + $0x550] sm:$0xff]
    %v525 = vld [vmem:[#allocation7 + $0x558] sm:$0xf]
    %v526 = vld [vmem:[#allocation7 + $0x55c] sm:$0xff]
    %v527 = vld [vmem:[#allocation7 + $0x564] sm:$0xff]
    %v528 = vld [vmem:[#allocation7 + $0x56c] sm:$0xff]
    %v529 = vld [vmem:[#allocation7 + $0x574] sm:$0xf]
    %v530 = vld [vmem:[#allocation7 + $0x578] sm:$0xff]
    %v531 = vld [vmem:[#allocation7 + $0x580] sm:$0xff]
    %v532 = vld [vmem:[#allocation7 + $0x588] sm:$0xff]
    %v533 = vld [vmem:[#allocation7 + $0x590] sm:$0xf]
    %v534 = vld [vmem:[#allocation7 + $0x594] sm:$0xff]
    %v535 = vld [vmem:[#allocation7 + $0x59c] sm:$0xff]
    %v536 = vld [vmem:[#allocation7 + $0x5a4] sm:$0xff]
    %v537 = vld [vmem:[#allocation7 + $0x5ac] sm:$0xf]
    %v538 = vld [vmem:[#allocation7 + $0x5b0] sm:$0xff]
    %v539 = vld [vmem:[#allocation7 + $0x5b8] sm:$0xff]
    %v540 = vld [vmem:[#allocation7 + $0x5c0] sm:$0xff]
    %v541 = vld [vmem:[#allocation7 + $0x5c8] sm:$0xf]
    %v542 = vld [vmem:[#allocation7 + $0x5cc] sm:$0xff]
    %v543 = vld [vmem:[#allocation7 + $0x5d4] sm:$0xff]
    %v544 = vld [vmem:[#allocation7 + $0x5dc] sm:$0xff]
    %v545 = vld [vmem:[#allocation7 + $0x5e4] sm:$0xf]
    %v546 = vld [vmem:[#allocation7 + $0x5e8] sm:$0xff]
    %v547 = vld [vmem:[#allocation7 + $0x5f0] sm:$0xff]
    %v548 = vld [vmem:[#allocation7 + $0x5f8] sm:$0xff]
    %v549 = vld [vmem:[#allocation7 + $0x600] sm:$0xf]
    %v550 = vld [vmem:[#allocation7 + $0x604] sm:$0xff]
    %v551 = vld [vmem:[#allocation7 + $0x60c] sm:$0xff]
    %v552 = vld [vmem:[#allocation7 + $0x614] sm:$0xff]
    %v553 = vld [vmem:[#allocation7 + $0x61c] sm:$0xf]
    %v554 = vld [vmem:[#allocation7 + $0x620] sm:$0xff]
    %v555 = vld [vmem:[#allocation7 + $0x628] sm:$0xff]
    %v556 = vld [vmem:[#allocation7 + $0x630] sm:$0xff]
    %v557 = vld [vmem:[#allocation7 + $0x638] sm:$0xf]
    %v558 = vld [vmem:[#allocation7 + $0x63c] sm:$0xff]
    %v559 = vld [vmem:[#allocation7 + $0x644] sm:$0xff]
    %v560 = vld [vmem:[#allocation7 + $0x64c] sm:$0xff]
    %v561 = vld [vmem:[#allocation7 + $0x654] sm:$0xf]
    %v562 = vld [vmem:[#allocation7 + $0x658] sm:$0xff]
    %v563 = vld [vmem:[#allocation7 + $0x660] sm:$0xff]
    %v564 = vld [vmem:[#allocation7 + $0x668] sm:$0xff]
    %v565 = vld [vmem:[#allocation7 + $0x670] sm:$0xf]
    %v566 = vld [vmem:[#allocation7 + $0x674] sm:$0xff]
    %v567 = vld [vmem:[#allocation7 + $0x67c] sm:$0xff]
    %v568 = vld [vmem:[#allocation7 + $0x684] sm:$0xff]
    %v569 = vld [vmem:[#allocation7 + $0x68c] sm:$0xf]
    %v570 = vld [vmem:[#allocation7 + $0x690] sm:$0xff]
    %v571 = vld [vmem:[#allocation7 + $0x698] sm:$0xff]
    %v572 = vld [vmem:[#allocation7 + $0x6a0] sm:$0xff]
    %v573 = vld [vmem:[#allocation7 + $0x6a8] sm:$0xf]
    %v574 = vld [vmem:[#allocation7 + $0x6ac] sm:$0xff]
    %v575 = vld [vmem:[#allocation7 + $0x6b4] sm:$0xff]
    %v576 = vld [vmem:[#allocation7 + $0x6bc] sm:$0xff]
    %v577 = vld [vmem:[#allocation7 + $0x6c4] sm:$0xf]
    %v578 = vld [vmem:[#allocation7 + $0x6c8] sm:$0xff]
    %v579 = vld [vmem:[#allocation7 + $0x6d0] sm:$0xff]
    %v580 = vld [vmem:[#allocation7 + $0x6d8] sm:$0xff]
    %v581 = vld [vmem:[#allocation7 + $0x6e0] sm:$0xf]
    %v582 = vld [vmem:[#allocation7 + $0x6e4] sm:$0xff]
    %v583 = vld [vmem:[#allocation7 + $0x6ec] sm:$0xff]
    %v584 = vld [vmem:[#allocation7 + $0x6f4] sm:$0xff]
    %v585 = vld [vmem:[#allocation7 + $0x6fc] sm:$0xf]
    %v586 = vld [vmem:[#allocation8] sm:$0xff]
    %v588 = vperm.slane %v586, 0
    %v589 = vperm.slane %v586, 1
    %v590 = vperm.slane %v586, 2
    %v591 = vperm.slane %v586, 3
    %v592 = vperm.slane %v586, 4
    %v593 = vperm.slane %v586, 5
    %v594 = vperm.slane %v586, 6
    %v858 = vunpack.c.l.b16 %v330
    %v859 = vunpack.c.h.b16 %v330
    %v860 = vunpack.c.l.b16 %v331
    %v861 = vunpack.c.h.b16 %v331
    %v862 = vunpack.c.l.b16 %v332
    %v863 = vunpack.c.h.b16 %v332
    %v864 = vunpack.c.l.b16 %v333
    %v865 = vunpack.c.l.b16 %v334
    %v866 = vunpack.c.h.b16 %v334
    %v867 = vunpack.c.l.b16 %v335
    %v868 = vunpack.c.h.b16 %v335
    %v869 = vunpack.c.l.b16 %v336
    %v870 = vunpack.c.h.b16 %v336
    %v871 = vunpack.c.l.b16 %v337
    %v872 = vunpack.c.l.b16 %v338
    %v873 = vunpack.c.h.b16 %v338
    %v874 = vunpack.c.l.b16 %v339
    %v875 = vunpack.c.h.b16 %v339
    %v876 = vunpack.c.l.b16 %v340
    %v877 = vunpack.c.h.b16 %v340
    %v878 = vunpack.c.l.b16 %v341
    %v879 = vunpack.c.l.b16 %v342
    %v880 = vunpack.c.h.b16 %v342
    %v881 = vunpack.c.l.b16 %v343
    %v882 = vunpack.c.h.b16 %v343
    %v883 = vunpack.c.l.b16 %v344
    %v884 = vunpack.c.h.b16 %v344
    %v885 = vunpack.c.l.b16 %v345
    %v886 = vunpack.c.l.b16 %v346
    %v887 = vunpack.c.h.b16 %v346
    %v888 = vunpack.c.l.b16 %v347
    %v889 = vunpack.c.h.b16 %v347
    %v890 = vunpack.c.l.b16 %v348
    %v891 = vunpack.c.h.b16 %v348
    %v892 = vunpack.c.l.b16 %v349
    %v893 = vunpack.c.l.b16 %v350
    %v894 = vunpack.c.h.b16 %v350
    %v895 = vunpack.c.l.b16 %v351
    %v896 = vunpack.c.h.b16 %v351
    %v897 = vunpack.c.l.b16 %v352
    %v898 = vunpack.c.h.b16 %v352
    %v899 = vunpack.c.l.b16 %v353
    %v900 = vunpack.c.l.b16 %v354
    %v901 = vunpack.c.h.b16 %v354
    %v902 = vunpack.c.l.b16 %v355
    %v903 = vunpack.c.h.b16 %v355
    %v904 = vunpack.c.l.b16 %v356
    %v905 = vunpack.c.h.b16 %v356
    %v906 = vunpack.c.l.b16 %v357
    %v907 = vunpack.c.l.b16 %v358
    %v908 = vunpack.c.h.b16 %v358
    %v909 = vunpack.c.l.b16 %v359
    %v910 = vunpack.c.h.b16 %v359
    %v911 = vunpack.c.l.b16 %v360
    %v912 = vunpack.c.h.b16 %v360
    %v913 = vunpack.c.l.b16 %v361
    %v914 = vunpack.c.l.b16 %v362
    %v915 = vunpack.c.h.b16 %v362
    %v916 = vunpack.c.l.b16 %v363
    %v917 = vunpack.c.h.b16 %v363
    %v918 = vunpack.c.l.b16 %v364
    %v919 = vunpack.c.h.b16 %v364
    %v920 = vunpack.c.l.b16 %v365
    %v921 = vunpack.c.l.b16 %v366
    %v922 = vunpack.c.h.b16 %v366
    %v923 = vunpack.c.l.b16 %v367
    %v924 = vunpack.c.h.b16 %v367
    %v925 = vunpack.c.l.b16 %v368
    %v926 = vunpack.c.h.b16 %v368
    %v927 = vunpack.c.l.b16 %v369
    %v928 = vunpack.c.l.b16 %v370
    %v929 = vunpack.c.h.b16 %v370
    %v930 = vunpack.c.l.b16 %v371
    %v931 = vunpack.c.h.b16 %v371
    %v932 = vunpack.c.l.b16 %v372
    %v933 = vunpack.c.h.b16 %v372
    %v934 = vunpack.c.l.b16 %v373
    %v935 = vunpack.c.l.b16 %v374
    %v936 = vunpack.c.h.b16 %v374
    %v937 = vunpack.c.l.b16 %v375
    %v938 = vunpack.c.h.b16 %v375
    %v939 = vunpack.c.l.b16 %v376
    %v940 = vunpack.c.h.b16 %v376
    %v941 = vunpack.c.l.b16 %v377
    %v942 = vunpack.c.l.b16 %v378
    %v943 = vunpack.c.h.b16 %v378
    %v944 = vunpack.c.l.b16 %v379
    %v945 = vunpack.c.h.b16 %v379
    %v946 = vunpack.c.l.b16 %v380
    %v947 = vunpack.c.h.b16 %v380
    %v948 = vunpack.c.l.b16 %v381
    %v949 = vunpack.c.l.b16 %v382
    %v950 = vunpack.c.h.b16 %v382
    %v951 = vunpack.c.l.b16 %v383
    %v952 = vunpack.c.h.b16 %v383
    %v953 = vunpack.c.l.b16 %v384
    %v954 = vunpack.c.h.b16 %v384
    %v955 = vunpack.c.l.b16 %v385
    %v956 = vunpack.c.l.b16 %v386
    %v957 = vunpack.c.h.b16 %v386
    %v958 = vunpack.c.l.b16 %v387
    %v959 = vunpack.c.h.b16 %v387
    %v960 = vunpack.c.l.b16 %v388
    %v961 = vunpack.c.h.b16 %v388
    %v962 = vunpack.c.l.b16 %v389
    %v963 = vunpack.c.l.b16 %v390
    %v964 = vunpack.c.h.b16 %v390
    %v965 = vunpack.c.l.b16 %v391
    %v966 = vunpack.c.h.b16 %v391
    %v967 = vunpack.c.l.b16 %v392
    %v968 = vunpack.c.h.b16 %v392
    %v969 = vunpack.c.l.b16 %v393
    %v970 = vunpack.c.l.b16 %v394
    %v971 = vunpack.c.h.b16 %v394
    %v972 = vunpack.c.l.b16 %v395
    %v973 = vunpack.c.h.b16 %v395
    %v974 = vunpack.c.l.b16 %v396
    %v975 = vunpack.c.h.b16 %v396
    %v976 = vunpack.c.l.b16 %v397
    %v977 = vunpack.c.l.b16 %v398
    %v978 = vunpack.c.h.b16 %v398
    %v979 = vunpack.c.l.b16 %v399
    %v980 = vunpack.c.h.b16 %v399
    %v981 = vunpack.c.l.b16 %v400
    %v982 = vunpack.c.h.b16 %v400
    %v983 = vunpack.c.l.b16 %v401
    %v984 = vunpack.c.l.b16 %v402
    %v985 = vunpack.c.h.b16 %v402
    %v986 = vunpack.c.l.b16 %v403
    %v987 = vunpack.c.h.b16 %v403
    %v988 = vunpack.c.l.b16 %v404
    %v989 = vunpack.c.h.b16 %v404
    %v990 = vunpack.c.l.b16 %v405
    %v991 = vunpack.c.l.b16 %v406
    %v992 = vunpack.c.h.b16 %v406
    %v993 = vunpack.c.l.b16 %v407
    %v994 = vunpack.c.h.b16 %v407
    %v995 = vunpack.c.l.b16 %v408
    %v996 = vunpack.c.h.b16 %v408
    %v997 = vunpack.c.l.b16 %v409
    %v998 = vunpack.c.l.b16 %v410
    %v999 = vunpack.c.h.b16 %v410
    %v1000 = vunpack.c.l.b16 %v411
    %v1001 = vunpack.c.h.b16 %v411
    %v1002 = vunpack.c.l.b16 %v412
    %v1003 = vunpack.c.h.b16 %v412
    %v1004 = vunpack.c.l.b16 %v413
    %v1005 = vunpack.c.l.b16 %v414
    %v1006 = vunpack.c.h.b16 %v414
    %v1007 = vunpack.c.l.b16 %v415
    %v1008 = vunpack.c.h.b16 %v415
    %v1009 = vunpack.c.l.b16 %v416
    %v1010 = vunpack.c.h.b16 %v416
    %v1011 = vunpack.c.l.b16 %v417
    %v1012 = vunpack.c.l.b16 %v418
    %v1013 = vunpack.c.h.b16 %v418
    %v1014 = vunpack.c.l.b16 %v419
    %v1015 = vunpack.c.h.b16 %v419
    %v1016 = vunpack.c.l.b16 %v420
    %v1017 = vunpack.c.h.b16 %v420
    %v1018 = vunpack.c.l.b16 %v421
    %v1019 = vunpack.c.l.b16 %v422
    %v1020 = vunpack.c.h.b16 %v422
    %v1021 = vunpack.c.l.b16 %v423
    %v1022 = vunpack.c.h.b16 %v423
    %v1023 = vunpack.c.l.b16 %v424
    %v1024 = vunpack.c.h.b16 %v424
    %v1025 = vunpack.c.l.b16 %v425
    %v1026 = vunpack.c.l.b16 %v426
    %v1027 = vunpack.c.h.b16 %v426
    %v1028 = vunpack.c.l.b16 %v427
    %v1029 = vunpack.c.h.b16 %v427
    %v1030 = vunpack.c.l.b16 %v428
    %v1031 = vunpack.c.h.b16 %v428
    %v1032 = vunpack.c.l.b16 %v429
    %v1033 = vunpack.c.l.b16 %v430
    %v1034 = vunpack.c.h.b16 %v430
    %v1035 = vunpack.c.l.b16 %v431
    %v1036 = vunpack.c.h.b16 %v431
    %v1037 = vunpack.c.l.b16 %v432
    %v1038 = vunpack.c.h.b16 %v432
    %v1039 = vunpack.c.l.b16 %v433
    %v1040 = vunpack.c.l.b16 %v434
    %v1041 = vunpack.c.h.b16 %v434
    %v1042 = vunpack.c.l.b16 %v435
    %v1043 = vunpack.c.h.b16 %v435
    %v1044 = vunpack.c.l.b16 %v436
    %v1045 = vunpack.c.h.b16 %v436
    %v1046 = vunpack.c.l.b16 %v437
    %v1047 = vunpack.c.l.b16 %v438
    %v1048 = vunpack.c.h.b16 %v438
    %v1049 = vunpack.c.l.b16 %v439
    %v1050 = vunpack.c.h.b16 %v439
    %v1051 = vunpack.c.l.b16 %v440
    %v1052 = vunpack.c.h.b16 %v440
    %v1053 = vunpack.c.l.b16 %v441
    %v1054 = vunpack.c.l.b16 %v442
    %v1055 = vunpack.c.h.b16 %v442
    %v1056 = vunpack.c.l.b16 %v443
    %v1057 = vunpack.c.h.b16 %v443
    %v1058 = vunpack.c.l.b16 %v444
    %v1059 = vunpack.c.h.b16 %v444
    %v1060 = vunpack.c.l.b16 %v445
    %v1061 = vunpack.c.l.b16 %v446
    %v1062 = vunpack.c.h.b16 %v446
    %v1063 = vunpack.c.l.b16 %v447
    %v1064 = vunpack.c.h.b16 %v447
    %v1065 = vunpack.c.l.b16 %v448
    %v1066 = vunpack.c.h.b16 %v448
    %v1067 = vunpack.c.l.b16 %v449
    %v1068 = vunpack.c.l.b16 %v450
    %v1069 = vunpack.c.h.b16 %v450
    %v1070 = vunpack.c.l.b16 %v451
    %v1071 = vunpack.c.h.b16 %v451
    %v1072 = vunpack.c.l.b16 %v452
    %v1073 = vunpack.c.h.b16 %v452
    %v1074 = vunpack.c.l.b16 %v453
    %v1075 = vunpack.c.l.b16 %v454
    %v1076 = vunpack.c.h.b16 %v454
    %v1077 = vunpack.c.l.b16 %v455
    %v1078 = vunpack.c.h.b16 %v455
    %v1079 = vunpack.c.l.b16 %v456
    %v1080 = vunpack.c.h.b16 %v456
    %v1081 = vunpack.c.l.b16 %v457
    %v1082 = vunpack.c.l.b16 %v458
    %v1083 = vunpack.c.h.b16 %v458
    %v1084 = vunpack.c.l.b16 %v459
    %v1085 = vunpack.c.h.b16 %v459
    %v1086 = vunpack.c.l.b16 %v460
    %v1087 = vunpack.c.h.b16 %v460
    %v1088 = vunpack.c.l.b16 %v461
    %v1089 = vunpack.c.l.b16 %v462
    %v1090 = vunpack.c.h.b16 %v462
    %v1091 = vunpack.c.l.b16 %v463
    %v1092 = vunpack.c.h.b16 %v463
    %v1093 = vunpack.c.l.b16 %v464
    %v1094 = vunpack.c.h.b16 %v464
    %v1095 = vunpack.c.l.b16 %v465
    %v1096 = vunpack.c.l.b16 %v466
    %v1097 = vunpack.c.h.b16 %v466
    %v1098 = vunpack.c.l.b16 %v467
    %v1099 = vunpack.c.h.b16 %v467
    %v1100 = vunpack.c.l.b16 %v468
    %v1101 = vunpack.c.h.b16 %v468
    %v1102 = vunpack.c.l.b16 %v469
    %v1103 = vunpack.c.l.b16 %v470
    %v1104 = vunpack.c.h.b16 %v470
    %v1105 = vunpack.c.l.b16 %v471
    %v1106 = vunpack.c.h.b16 %v471
    %v1107 = vunpack.c.l.b16 %v472
    %v1108 = vunpack.c.h.b16 %v472
    %v1109 = vunpack.c.l.b16 %v473
    %v1110 = vunpack.c.l.b16 %v474
    %v1111 = vunpack.c.h.b16 %v474
    %v1112 = vunpack.c.l.b16 %v475
    %v1113 = vunpack.c.h.b16 %v475
    %v1114 = vunpack.c.l.b16 %v476
    %v1115 = vunpack.c.h.b16 %v476
    %v1116 = vunpack.c.l.b16 %v477
    %v1117 = vunpack.c.l.b16 %v478
    %v1118 = vunpack.c.h.b16 %v478
    %v1119 = vunpack.c.l.b16 %v479
    %v1120 = vunpack.c.h.b16 %v479
    %v1121 = vunpack.c.l.b16 %v480
    %v1122 = vunpack.c.h.b16 %v480
    %v1123 = vunpack.c.l.b16 %v481
    %v1124 = vunpack.c.l.b16 %v482
    %v1125 = vunpack.c.h.b16 %v482
    %v1126 = vunpack.c.l.b16 %v483
    %v1127 = vunpack.c.h.b16 %v483
    %v1128 = vunpack.c.l.b16 %v484
    %v1129 = vunpack.c.h.b16 %v484
    %v1130 = vunpack.c.l.b16 %v485
    %v1131 = vunpack.c.l.b16 %v486
    %v1132 = vunpack.c.h.b16 %v486
    %v1133 = vunpack.c.l.b16 %v487
    %v1134 = vunpack.c.h.b16 %v487
    %v1135 = vunpack.c.l.b16 %v488
    %v1136 = vunpack.c.h.b16 %v488
    %v1137 = vunpack.c.l.b16 %v489
    %v1138 = vunpack.c.l.b16 %v490
    %v1139 = vunpack.c.h.b16 %v490
    %v1140 = vunpack.c.l.b16 %v491
    %v1141 = vunpack.c.h.b16 %v491
    %v1142 = vunpack.c.l.b16 %v492
    %v1143 = vunpack.c.h.b16 %v492
    %v1144 = vunpack.c.l.b16 %v493
    %v1145 = vunpack.c.l.b16 %v494
    %v1146 = vunpack.c.h.b16 %v494
    %v1147 = vunpack.c.l.b16 %v495
    %v1148 = vunpack.c.h.b16 %v495
    %v1149 = vunpack.c.l.b16 %v496
    %v1150 = vunpack.c.h.b16 %v496
    %v1151 = vunpack.c.l.b16 %v497
    %v1152 = vunpack.c.l.b16 %v498
    %v1153 = vunpack.c.h.b16 %v498
    %v1154 = vunpack.c.l.b16 %v499
    %v1155 = vunpack.c.h.b16 %v499
    %v1156 = vunpack.c.l.b16 %v500
    %v1157 = vunpack.c.h.b16 %v500
    %v1158 = vunpack.c.l.b16 %v501
    %v1159 = vunpack.c.l.b16 %v502
    %v1160 = vunpack.c.h.b16 %v502
    %v1161 = vunpack.c.l.b16 %v503
    %v1162 = vunpack.c.h.b16 %v503
    %v1163 = vunpack.c.l.b16 %v504
    %v1164 = vunpack.c.h.b16 %v504
    %v1165 = vunpack.c.l.b16 %v505
    %v1166 = vunpack.c.l.b16 %v506
    %v1167 = vunpack.c.h.b16 %v506
    %v1168 = vunpack.c.l.b16 %v507
    %v1169 = vunpack.c.h.b16 %v507
    %v1170 = vunpack.c.l.b16 %v508
    %v1171 = vunpack.c.h.b16 %v508
    %v1172 = vunpack.c.l.b16 %v509
    %v1173 = vunpack.c.l.b16 %v510
    %v1174 = vunpack.c.h.b16 %v510
    %v1175 = vunpack.c.l.b16 %v511
    %v1176 = vunpack.c.h.b16 %v511
    %v1177 = vunpack.c.l.b16 %v512
    %v1178 = vunpack.c.h.b16 %v512
    %v1179 = vunpack.c.l.b16 %v513
    %v1180 = vunpack.c.l.b16 %v514
    %v1181 = vunpack.c.h.b16 %v514
    %v1182 = vunpack.c.l.b16 %v515
    %v1183 = vunpack.c.h.b16 %v515
    %v1184 = vunpack.c.l.b16 %v516
    %v1185 = vunpack.c.h.b16 %v516
    %v1186 = vunpack.c.l.b16 %v517
    %v1187 = vunpack.c.l.b16 %v518
    %v1188 = vunpack.c.h.b16 %v518
    %v1189 = vunpack.c.l.b16 %v519
    %v1190 = vunpack.c.h.b16 %v519
    %v1191 = vunpack.c.l.b16 %v520
    %v1192 = vunpack.c.h.b16 %v520
    %v1193 = vunpack.c.l.b16 %v521
    %v1194 = vunpack.c.l.b16 %v522
    %v1195 = vunpack.c.h.b16 %v522
    %v1196 = vunpack.c.l.b16 %v523
    %v1197 = vunpack.c.h.b16 %v523
    %v1198 = vunpack.c.l.b16 %v524
    %v1199 = vunpack.c.h.b16 %v524
    %v1200 = vunpack.c.l.b16 %v525
    %v1201 = vunpack.c.l.b16 %v526
    %v1202 = vunpack.c.h.b16 %v526
    %v1203 = vunpack.c.l.b16 %v527
    %v1204 = vunpack.c.h.b16 %v527
    %v1205 = vunpack.c.l.b16 %v528
    %v1206 = vunpack.c.h.b16 %v528
    %v1207 = vunpack.c.l.b16 %v529
    %v1208 = vunpack.c.l.b16 %v530
    %v1209 = vunpack.c.h.b16 %v530
    %v1210 = vunpack.c.l.b16 %v531
    %v1211 = vunpack.c.h.b16 %v531
    %v1212 = vunpack.c.l.b16 %v532
    %v1213 = vunpack.c.h.b16 %v532
    %v1214 = vunpack.c.l.b16 %v533
    %v1215 = vunpack.c.l.b16 %v534
    %v1216 = vunpack.c.h.b16 %v534
    %v1217 = vunpack.c.l.b16 %v535
    %v1218 = vunpack.c.h.b16 %v535
    %v1219 = vunpack.c.l.b16 %v536
    %v1220 = vunpack.c.h.b16 %v536
    %v1221 = vunpack.c.l.b16 %v537
    %v1222 = vunpack.c.l.b16 %v538
    %v1223 = vunpack.c.h.b16 %v538
    %v1224 = vunpack.c.l.b16 %v539
    %v1225 = vunpack.c.h.b16 %v539
    %v1226 = vunpack.c.l.b16 %v540
    %v1227 = vunpack.c.h.b16 %v540
    %v1228 = vunpack.c.l.b16 %v541
    %v1229 = vunpack.c.l.b16 %v542
    %v1230 = vunpack.c.h.b16 %v542
    %v1231 = vunpack.c.l.b16 %v543
    %v1232 = vunpack.c.h.b16 %v543
    %v1233 = vunpack.c.l.b16 %v544
    %v1234 = vunpack.c.h.b16 %v544
    %v1235 = vunpack.c.l.b16 %v545
    %v1236 = vunpack.c.l.b16 %v546
    %v1237 = vunpack.c.h.b16 %v546
    %v1238 = vunpack.c.l.b16 %v547
    %v1239 = vunpack.c.h.b16 %v547
    %v1240 = vunpack.c.l.b16 %v548
    %v1241 = vunpack.c.h.b16 %v548
    %v1242 = vunpack.c.l.b16 %v549
    %v1243 = vunpack.c.l.b16 %v550
    %v1244 = vunpack.c.h.b16 %v550
    %v1245 = vunpack.c.l.b16 %v551
    %v1246 = vunpack.c.h.b16 %v551
    %v1247 = vunpack.c.l.b16 %v552
    %v1248 = vunpack.c.h.b16 %v552
    %v1249 = vunpack.c.l.b16 %v553
    %v1250 = vunpack.c.l.b16 %v554
    %v1251 = vunpack.c.h.b16 %v554
    %v1252 = vunpack.c.l.b16 %v555
    %v1253 = vunpack.c.h.b16 %v555
    %v1254 = vunpack.c.l.b16 %v556
    %v1255 = vunpack.c.h.b16 %v556
    %v1256 = vunpack.c.l.b16 %v557
    %v1257 = vunpack.c.l.b16 %v558
    %v1258 = vunpack.c.h.b16 %v558
    %v1259 = vunpack.c.l.b16 %v559
    %v1260 = vunpack.c.h.b16 %v559
    %v1261 = vunpack.c.l.b16 %v560
    %v1262 = vunpack.c.h.b16 %v560
    %v1263 = vunpack.c.l.b16 %v561
    %v1264 = vunpack.c.l.b16 %v562
    %v1265 = vunpack.c.h.b16 %v562
    %v1266 = vunpack.c.l.b16 %v563
    %v1267 = vunpack.c.h.b16 %v563
    %v1268 = vunpack.c.l.b16 %v564
    %v1269 = vunpack.c.h.b16 %v564
    %v1270 = vunpack.c.l.b16 %v565
    %v1271 = vunpack.c.l.b16 %v566
    %v1272 = vunpack.c.h.b16 %v566
    %v1273 = vunpack.c.l.b16 %v567
    %v1274 = vunpack.c.h.b16 %v567
    %v1275 = vunpack.c.l.b16 %v568
    %v1276 = vunpack.c.h.b16 %v568
    %v1277 = vunpack.c.l.b16 %v569
    %v1278 = vunpack.c.l.b16 %v570
    %v1279 = vunpack.c.h.b16 %v570
    %v1280 = vunpack.c.l.b16 %v571
    %v1281 = vunpack.c.h.b16 %v571
    %v1282 = vunpack.c.l.b16 %v572
    %v1283 = vunpack.c.h.b16 %v572
    %v1284 = vunpack.c.l.b16 %v573
    %v1285 = vunpack.c.l.b16 %v574
    %v1286 = vunpack.c.h.b16 %v574
    %v1287 = vunpack.c.l.b16 %v575
    %v1288 = vunpack.c.h.b16 %v575
    %v1289 = vunpack.c.l.b16 %v576
    %v1290 = vunpack.c.h.b16 %v576
    %v1291 = vunpack.c.l.b16 %v577
    %v1292 = vunpack.c.l.b16 %v578
    %v1293 = vunpack.c.h.b16 %v578
    %v1294 = vunpack.c.l.b16 %v579
    %v1295 = vunpack.c.h.b16 %v579
    %v1296 = vunpack.c.l.b16 %v580
    %v1297 = vunpack.c.h.b16 %v580
    %v1298 = vunpack.c.l.b16 %v581
    %v1299 = vunpack.c.l.b16 %v582
    %v1300 = vunpack.c.h.b16 %v582
    %v1301 = vunpack.c.l.b16 %v583
    %v1302 = vunpack.c.h.b16 %v583
    %v1303 = vunpack.c.l.b16 %v584
    %v1304 = vunpack.c.h.b16 %v584
    %v1305 = vunpack.c.l.b16 %v585
    %v1306 = vpack.c.b16 %v865, %v858
    %v1307 = vpack.c.b16 %v866, %v859
    %v1308 = vpack.c.b16 %v867, %v860
    %v1309 = vpack.c.b16 %v868, %v861
    %v1310 = vpack.c.b16 %v869, %v862
    %v1311 = vpack.c.b16 %v870, %v863
    %v1312 = vpack.c.b16 %v871, %v864
    %v1313 = vpack.c.b16 %v879, %v872
    %v1314 = vpack.c.b16 %v880, %v873
    %v1315 = vpack.c.b16 %v881, %v874
    %v1316 = vpack.c.b16 %v882, %v875
    %v1317 = vpack.c.b16 %v883, %v876
    %v1318 = vpack.c.b16 %v884, %v877
    %v1319 = vpack.c.b16 %v885, %v878
    %v1320 = vpack.c.b16 %v893, %v886
    %v1321 = vpack.c.b16 %v894, %v887
    %v1322 = vpack.c.b16 %v895, %v888
    %v1323 = vpack.c.b16 %v896, %v889
    %v1324 = vpack.c.b16 %v897, %v890
    %v1325 = vpack.c.b16 %v898, %v891
    %v1326 = vpack.c.b16 %v899, %v892
    %v1327 = vpack.c.b16 %v907, %v900
    %v1328 = vpack.c.b16 %v908, %v901
    %v1329 = vpack.c.b16 %v909, %v902
    %v1330 = vpack.c.b16 %v910, %v903
    %v1331 = vpack.c.b16 %v911, %v904
    %v1332 = vpack.c.b16 %v912, %v905
    %v1333 = vpack.c.b16 %v913, %v906
    %v1334 = vpack.c.b16 %v921, %v914
    %v1335 = vpack.c.b16 %v922, %v915
    %v1336 = vpack.c.b16 %v923, %v916
    %v1337 = vpack.c.b16 %v924, %v917
    %v1338 = vpack.c.b16 %v925, %v918
    %v1339 = vpack.c.b16 %v926, %v919
    %v1340 = vpack.c.b16 %v927, %v920
    %v1341 = vpack.c.b16 %v935, %v928
    %v1342 = vpack.c.b16 %v936, %v929
    %v1343 = vpack.c.b16 %v937, %v930
    %v1344 = vpack.c.b16 %v938, %v931
    %v1345 = vpack.c.b16 %v939, %v932
    %v1346 = vpack.c.b16 %v940, %v933
    %v1347 = vpack.c.b16 %v941, %v934
    %v1348 = vpack.c.b16 %v949, %v942
    %v1349 = vpack.c.b16 %v950, %v943
    %v1350 = vpack.c.b16 %v951, %v944
    %v1351 = vpack.c.b16 %v952, %v945
    %v1352 = vpack.c.b16 %v953, %v946
    %v1353 = vpack.c.b16 %v954, %v947
    %v1354 = vpack.c.b16 %v955, %v948
    %v1355 = vpack.c.b16 %v963, %v956
    %v1356 = vpack.c.b16 %v964, %v957
    %v1357 = vpack.c.b16 %v965, %v958
    %v1358 = vpack.c.b16 %v966, %v959
    %v1359 = vpack.c.b16 %v967, %v960
    %v1360 = vpack.c.b16 %v968, %v961
    %v1361 = vpack.c.b16 %v969, %v962
    %v1362 = vpack.c.b16 %v977, %v970
    %v1363 = vpack.c.b16 %v978, %v971
    %v1364 = vpack.c.b16 %v979, %v972
    %v1365 = vpack.c.b16 %v980, %v973
    %v1366 = vpack.c.b16 %v981, %v974
    %v1367 = vpack.c.b16 %v982, %v975
    %v1368 = vpack.c.b16 %v983, %v976
    %v1369 = vpack.c.b16 %v991, %v984
    %v1370 = vpack.c.b16 %v992, %v985
    %v1371 = vpack.c.b16 %v993, %v986
    %v1372 = vpack.c.b16 %v994, %v987
    %v1373 = vpack.c.b16 %v995, %v988
    %v1374 = vpack.c.b16 %v996, %v989
    %v1375 = vpack.c.b16 %v997, %v990
    %v1376 = vpack.c.b16 %v1005, %v998
    %v1377 = vpack.c.b16 %v1006, %v999
    %v1378 = vpack.c.b16 %v1007, %v1000
    %v1379 = vpack.c.b16 %v1008, %v1001
    %v1380 = vpack.c.b16 %v1009, %v1002
    %v1381 = vpack.c.b16 %v1010, %v1003
    %v1382 = vpack.c.b16 %v1011, %v1004
    %v1383 = vpack.c.b16 %v1019, %v1012
    %v1384 = vpack.c.b16 %v1020, %v1013
    %v1385 = vpack.c.b16 %v1021, %v1014
    %v1386 = vpack.c.b16 %v1022, %v1015
    %v1387 = vpack.c.b16 %v1023, %v1016
    %v1388 = vpack.c.b16 %v1024, %v1017
    %v1389 = vpack.c.b16 %v1025, %v1018
    %v1390 = vpack.c.b16 %v1033, %v1026
    %v1391 = vpack.c.b16 %v1034, %v1027
    %v1392 = vpack.c.b16 %v1035, %v1028
    %v1393 = vpack.c.b16 %v1036, %v1029
    %v1394 = vpack.c.b16 %v1037, %v1030
    %v1395 = vpack.c.b16 %v1038, %v1031
    %v1396 = vpack.c.b16 %v1039, %v1032
    %v1397 = vpack.c.b16 %v1047, %v1040
    %v1398 = vpack.c.b16 %v1048, %v1041
    %v1399 = vpack.c.b16 %v1049, %v1042
    %v1400 = vpack.c.b16 %v1050, %v1043
    %v1401 = vpack.c.b16 %v1051, %v1044
    %v1402 = vpack.c.b16 %v1052, %v1045
    %v1403 = vpack.c.b16 %v1053, %v1046
    %v1404 = vpack.c.b16 %v1061, %v1054
    %v1405 = vpack.c.b16 %v1062, %v1055
    %v1406 = vpack.c.b16 %v1063, %v1056
    %v1407 = vpack.c.b16 %v1064, %v1057
    %v1408 = vpack.c.b16 %v1065, %v1058
    %v1409 = vpack.c.b16 %v1066, %v1059
    %v1410 = vpack.c.b16 %v1067, %v1060
    %v1411 = vpack.c.b16 %v1075, %v1068
    %v1412 = vpack.c.b16 %v1076, %v1069
    %v1413 = vpack.c.b16 %v1077, %v1070
    %v1414 = vpack.c.b16 %v1078, %v1071
    %v1415 = vpack.c.b16 %v1079, %v1072
    %v1416 = vpack.c.b16 %v1080, %v1073
    %v1417 = vpack.c.b16 %v1081, %v1074
    %v1418 = vpack.c.b16 %v1089, %v1082
    %v1419 = vpack.c.b16 %v1090, %v1083
    %v1420 = vpack.c.b16 %v1091, %v1084
    %v1421 = vpack.c.b16 %v1092, %v1085
    %v1422 = vpack.c.b16 %v1093, %v1086
    %v1423 = vpack.c.b16 %v1094, %v1087
    %v1424 = vpack.c.b16 %v1095, %v1088
    %v1425 = vpack.c.b16 %v1103, %v1096
    %v1426 = vpack.c.b16 %v1104, %v1097
    %v1427 = vpack.c.b16 %v1105, %v1098
    %v1428 = vpack.c.b16 %v1106, %v1099
    %v1429 = vpack.c.b16 %v1107, %v1100
    %v1430 = vpack.c.b16 %v1108, %v1101
    %v1431 = vpack.c.b16 %v1109, %v1102
    %v1432 = vpack.c.b16 %v1117, %v1110
    %v1433 = vpack.c.b16 %v1118, %v1111
    %v1434 = vpack.c.b16 %v1119, %v1112
    %v1435 = vpack.c.b16 %v1120, %v1113
    %v1436 = vpack.c.b16 %v1121, %v1114
    %v1437 = vpack.c.b16 %v1122, %v1115
    %v1438 = vpack.c.b16 %v1123, %v1116
    %v1439 = vpack.c.b16 %v1131, %v1124
    %v1440 = vpack.c.b16 %v1132, %v1125
    %v1441 = vpack.c.b16 %v1133, %v1126
    %v1442 = vpack.c.b16 %v1134, %v1127
    %v1443 = vpack.c.b16 %v1135, %v1128
    %v1444 = vpack.c.b16 %v1136, %v1129
    %v1445 = vpack.c.b16 %v1137, %v1130
    %v1446 = vpack.c.b16 %v1145, %v1138
    %v1447 = vpack.c.b16 %v1146, %v1139
    %v1448 = vpack.c.b16 %v1147, %v1140
    %v1449 = vpack.c.b16 %v1148, %v1141
    %v1450 = vpack.c.b16 %v1149, %v1142
    %v1451 = vpack.c.b16 %v1150, %v1143
    %v1452 = vpack.c.b16 %v1151, %v1144
    %v1453 = vpack.c.b16 %v1159, %v1152
    %v1454 = vpack.c.b16 %v1160, %v1153
    %v1455 = vpack.c.b16 %v1161, %v1154
    %v1456 = vpack.c.b16 %v1162, %v1155
    %v1457 = vpack.c.b16 %v1163, %v1156
    %v1458 = vpack.c.b16 %v1164, %v1157
    %v1459 = vpack.c.b16 %v1165, %v1158
    %v1460 = vpack.c.b16 %v1173, %v1166
    %v1461 = vpack.c.b16 %v1174, %v1167
    %v1462 = vpack.c.b16 %v1175, %v1168
    %v1463 = vpack.c.b16 %v1176, %v1169
    %v1464 = vpack.c.b16 %v1177, %v1170
    %v1465 = vpack.c.b16 %v1178, %v1171
    %v1466 = vpack.c.b16 %v1179, %v1172
    %v1467 = vpack.c.b16 %v1187, %v1180
    %v1468 = vpack.c.b16 %v1188, %v1181
    %v1469 = vpack.c.b16 %v1189, %v1182
    %v1470 = vpack.c.b16 %v1190, %v1183
    %v1471 = vpack.c.b16 %v1191, %v1184
    %v1472 = vpack.c.b16 %v1192, %v1185
    %v1473 = vpack.c.b16 %v1193, %v1186
    %v1474 = vpack.c.b16 %v1201, %v1194
    %v1475 = vpack.c.b16 %v1202, %v1195
    %v1476 = vpack.c.b16 %v1203, %v1196
    %v1477 = vpack.c.b16 %v1204, %v1197
    %v1478 = vpack.c.b16 %v1205, %v1198
    %v1479 = vpack.c.b16 %v1206, %v1199
    %v1480 = vpack.c.b16 %v1207, %v1200
    %v1481 = vpack.c.b16 %v1215, %v1208
    %v1482 = vpack.c.b16 %v1216, %v1209
    %v1483 = vpack.c.b16 %v1217, %v1210
    %v1484 = vpack.c.b16 %v1218, %v1211
    %v1485 = vpack.c.b16 %v1219, %v1212
    %v1486 = vpack.c.b16 %v1220, %v1213
    %v1487 = vpack.c.b16 %v1221, %v1214
    %v1488 = vpack.c.b16 %v1229, %v1222
    %v1489 = vpack.c.b16 %v1230, %v1223
    %v1490 = vpack.c.b16 %v1231, %v1224
    %v1491 = vpack.c.b16 %v1232, %v1225
    %v1492 = vpack.c.b16 %v1233, %v1226
    %v1493 = vpack.c.b16 %v1234, %v1227
    %v1494 = vpack.c.b16 %v1235, %v1228
    %v1495 = vpack.c.b16 %v1243, %v1236
    %v1496 = vpack.c.b16 %v1244, %v1237
    %v1497 = vpack.c.b16 %v1245, %v1238
    %v1498 = vpack.c.b16 %v1246, %v1239
    %v1499 = vpack.c.b16 %v1247, %v1240
    %v1500 = vpack.c.b16 %v1248, %v1241
    %v1501 = vpack.c.b16 %v1249, %v1242
    %v1502 = vpack.c.b16 %v1257, %v1250
    %v1503 = vpack.c.b16 %v1258, %v1251
    %v1504 = vpack.c.b16 %v1259, %v1252
    %v1505 = vpack.c.b16 %v1260, %v1253
    %v1506 = vpack.c.b16 %v1261, %v1254
    %v1507 = vpack.c.b16 %v1262, %v1255
    %v1508 = vpack.c.b16 %v1263, %v1256
    %v1509 = vpack.c.b16 %v1271, %v1264
    %v1510 = vpack.c.b16 %v1272, %v1265
    %v1511 = vpack.c.b16 %v1273, %v1266
    %v1512 = vpack.c.b16 %v1274, %v1267
    %v1513 = vpack.c.b16 %v1275, %v1268
    %v1514 = vpack.c.b16 %v1276, %v1269
    %v1515 = vpack.c.b16 %v1277, %v1270
    %v1516 = vpack.c.b16 %v1285, %v1278
    %v1517 = vpack.c.b16 %v1286, %v1279
    %v1518 = vpack.c.b16 %v1287, %v1280
    %v1519 = vpack.c.b16 %v1288, %v1281
    %v1520 = vpack.c.b16 %v1289, %v1282
    %v1521 = vpack.c.b16 %v1290, %v1283
    %v1522 = vpack.c.b16 %v1291, %v1284
    %v1523 = vpack.c.b16 %v1299, %v1292
    %v1524 = vpack.c.b16 %v1300, %v1293
    %v1525 = vpack.c.b16 %v1301, %v1294
    %v1526 = vpack.c.b16 %v1302, %v1295
    %v1527 = vpack.c.b16 %v1303, %v1296
    %v1528 = vpack.c.b16 %v1304, %v1297
    %v1529 = vpack.c.b16 %v1305, %v1298
    %1754 = vmatpush.bf16.msra.mxu0 %v1355
    %1755 = vmatpush.bf16.msra.mxu0 %v1348
    %1756 = vmatpush.bf16.msra.mxu0 %v1341
    %1757 = vmatpush.bf16.msra.mxu0 %v1334
    %1758 = vmatpush.bf16.msra.mxu0 %v1327
    %1759 = vmatpush.bf16.msra.mxu0 %v1320
    %1760 = vmatpush.bf16.msra.mxu0 %v1313
    %1761 = vmatpush.bf16.msra.mxu0 %v1306
    %1762 = vmatmul.bf16.gmra.mxu0 %v326
    %v1763 = vpop.f32.mrf.mxu0
    %v1764 = vadd.f32 %v588, %v1763
    %v1765 = vpop.f32.mrf.mxu0
    %1766 = vdwg.mxu0
    %1767 = vmatpush.bf16.msra.mxu0 %v1411
    %1768 = vmatpush.bf16.msra.mxu0 %v1404
    %1769 = vmatpush.bf16.msra.mxu0 %v1397
    %1770 = vmatpush.bf16.msra.mxu0 %v1390
    %1771 = vmatpush.bf16.msra.mxu0 %v1383
    %1772 = vmatpush.bf16.msra.mxu0 %v1376
    %1773 = vmatpush.bf16.msra.mxu0 %v1369
    %1774 = vmatpush.bf16.msra.mxu0 %v1362
    %1775 = vmatmul.bf16.gmra.mxu0 %v327
    %v1776 = vpop.f32.mrf.mxu0
    %v1777 = vadd.f32 %v1764, %v1776
    %v1778 = vpop.f32.mrf.mxu0
    %1779 = vdwg.mxu0
    %1780 = vmatpush.bf16.msra.mxu0 %v1467
    %1781 = vmatpush.bf16.msra.mxu0 %v1460
    %1782 = vmatpush.bf16.msra.mxu0 %v1453
    %1783 = vmatpush.bf16.msra.mxu0 %v1446
    %1784 = vmatpush.bf16.msra.mxu0 %v1439
    %1785 = vmatpush.bf16.msra.mxu0 %v1432
    %1786 = vmatpush.bf16.msra.mxu0 %v1425
    %1787 = vmatpush.bf16.msra.mxu0 %v1418
    %1788 = vmatmul.bf16.gmra.mxu0 %v328
    %v1789 = vpop.f32.mrf.mxu0
    %v1790 = vadd.f32 %v1777, %v1789
    %v1791 = vpop.f32.mrf.mxu0
    %1792 = vdwg.mxu0
    %1793 = vmatpush.bf16.msra.mxu0 %v1523
    %1794 = vmatpush.bf16.msra.mxu0 %v1516
    %1795 = vmatpush.bf16.msra.mxu0 %v1509
    %1796 = vmatpush.bf16.msra.mxu0 %v1502
    %1797 = vmatpush.bf16.msra.mxu0 %v1495
    %1798 = vmatpush.bf16.msra.mxu0 %v1488
    %1799 = vmatpush.bf16.msra.mxu0 %v1481
    %1800 = vmatpush.bf16.msra.mxu0 %v1474
    %1801 = vmatmul.bf16.gmra.mxu0 %v329
    %v1802 = vpop.f32.mrf.mxu0
    %v1803 = vadd.f32 %v1790, %v1802
    %v1804 = vpop.f32.mrf.mxu0
    %1805 = vdwg.mxu0
    %1806 = vmatpush.bf16.msra.mxu0 %v1356
    %1807 = vmatpush.bf16.msra.mxu0 %v1349
    %1808 = vmatpush.bf16.msra.mxu0 %v1342
    %1809 = vmatpush.bf16.msra.mxu0 %v1335
    %1810 = vmatpush.bf16.msra.mxu0 %v1328
    %1811 = vmatpush.bf16.msra.mxu0 %v1321
    %1812 = vmatpush.bf16.msra.mxu0 %v1314
    %1813 = vmatpush.bf16.msra.mxu0 %v1307
    %1814 = vmatmul.bf16.gmra.mxu0 %v326
    %v1815 = vpop.f32.mrf.mxu0
    %v1816 = vadd.f32 %v589, %v1815
    %v1817 = vpop.f32.mrf.mxu0
    %1818 = vdwg.mxu0
    %1819 = vmatpush.bf16.msra.mxu0 %v1412
    %1820 = vmatpush.bf16.msra.mxu0 %v1405
    %1821 = vmatpush.bf16.msra.mxu0 %v1398
    %1822 = vmatpush.bf16.msra.mxu0 %v1391
    %1823 = vmatpush.bf16.msra.mxu0 %v1384
    %1824 = vmatpush.bf16.msra.mxu0 %v1377
    %1825 = vmatpush.bf16.msra.mxu0 %v1370
    %1826 = vmatpush.bf16.msra.mxu0 %v1363
    %1827 = vmatmul.bf16.gmra.mxu0 %v327
    %v1828 = vpop.f32.mrf.mxu0
    %v1829 = vadd.f32 %v1816, %v1828
    %v1830 = vpop.f32.mrf.mxu0
    %1831 = vdwg.mxu0
    %1832 = vmatpush.bf16.msra.mxu0 %v1468
    %1833 = vmatpush.bf16.msra.mxu0 %v1461
    %1834 = vmatpush.bf16.msra.mxu0 %v1454
    %1835 = vmatpush.bf16.msra.mxu0 %v1447
    %1836 = vmatpush.bf16.msra.mxu0 %v1440
    %1837 = vmatpush.bf16.msra.mxu0 %v1433
    %1838 = vmatpush.bf16.msra.mxu0 %v1426
    %1839 = vmatpush.bf16.msra.mxu0 %v1419
    %1840 = vmatmul.bf16.gmra.mxu0 %v328
    %v1841 = vpop.f32.mrf.mxu0
    %v1842 = vadd.f32 %v1829, %v1841
    %v1843 = vpop.f32.mrf.mxu0
    %1844 = vdwg.mxu0
    %1845 = vmatpush.bf16.msra.mxu0 %v1524
    %1846 = vmatpush.bf16.msra.mxu0 %v1517
    %1847 = vmatpush.bf16.msra.mxu0 %v1510
    %1848 = vmatpush.bf16.msra.mxu0 %v1503
    %1849 = vmatpush.bf16.msra.mxu0 %v1496
    %1850 = vmatpush.bf16.msra.mxu0 %v1489
    %1851 = vmatpush.bf16.msra.mxu0 %v1482
    %1852 = vmatpush.bf16.msra.mxu0 %v1475
    %1853 = vmatmul.bf16.gmra.mxu0 %v329
    %v1854 = vpop.f32.mrf.mxu0
    %v1855 = vadd.f32 %v1842, %v1854
    %v1856 = vpop.f32.mrf.mxu0
    %1857 = vdwg.mxu0
    %1858 = vmatpush.bf16.msra.mxu0 %v1357
    %1859 = vmatpush.bf16.msra.mxu0 %v1350
    %1860 = vmatpush.bf16.msra.mxu0 %v1343
    %1861 = vmatpush.bf16.msra.mxu0 %v1336
    %1862 = vmatpush.bf16.msra.mxu0 %v1329
    %1863 = vmatpush.bf16.msra.mxu0 %v1322
    %1864 = vmatpush.bf16.msra.mxu0 %v1315
    %1865 = vmatpush.bf16.msra.mxu0 %v1308
    %1866 = vmatmul.bf16.gmra.mxu0 %v326
    %v1867 = vpop.f32.mrf.mxu0
    %v1868 = vadd.f32 %v590, %v1867
    %v1869 = vpop.f32.mrf.mxu0
    %1870 = vdwg.mxu0
    %1871 = vmatpush.bf16.msra.mxu0 %v1413
    %1872 = vmatpush.bf16.msra.mxu0 %v1406
    %1873 = vmatpush.bf16.msra.mxu0 %v1399
    %1874 = vmatpush.bf16.msra.mxu0 %v1392
    %1875 = vmatpush.bf16.msra.mxu0 %v1385
    %1876 = vmatpush.bf16.msra.mxu0 %v1378
    %1877 = vmatpush.bf16.msra.mxu0 %v1371
    %1878 = vmatpush.bf16.msra.mxu0 %v1364
    %1879 = vmatmul.bf16.gmra.mxu0 %v327
    %v1880 = vpop.f32.mrf.mxu0
    %v1881 = vadd.f32 %v1868, %v1880
    %v1882 = vpop.f32.mrf.mxu0
    %1883 = vdwg.mxu0
    %1884 = vmatpush.bf16.msra.mxu0 %v1469
    %1885 = vmatpush.bf16.msra.mxu0 %v1462
    %1886 = vmatpush.bf16.msra.mxu0 %v1455
    %1887 = vmatpush.bf16.msra.mxu0 %v1448
    %1888 = vmatpush.bf16.msra.mxu0 %v1441
    %1889 = vmatpush.bf16.msra.mxu0 %v1434
    %1890 = vmatpush.bf16.msra.mxu0 %v1427
    %1891 = vmatpush.bf16.msra.mxu0 %v1420
    %1892 = vmatmul.bf16.gmra.mxu0 %v328
    %v1893 = vpop.f32.mrf.mxu0
    %v1894 = vadd.f32 %v1881, %v1893
    %v1895 = vpop.f32.mrf.mxu0
    %1896 = vdwg.mxu0
    %1897 = vmatpush.bf16.msra.mxu0 %v1525
    %1898 = vmatpush.bf16.msra.mxu0 %v1518
    %1899 = vmatpush.bf16.msra.mxu0 %v1511
    %1900 = vmatpush.bf16.msra.mxu0 %v1504
    %1901 = vmatpush.bf16.msra.mxu0 %v1497
    %1902 = vmatpush.bf16.msra.mxu0 %v1490
    %1903 = vmatpush.bf16.msra.mxu0 %v1483
    %1904 = vmatpush.bf16.msra.mxu0 %v1476
    %1905 = vmatmul.bf16.gmra.mxu0 %v329
    %v1906 = vpop.f32.mrf.mxu0
    %v1907 = vadd.f32 %v1894, %v1906
    %v1908 = vpop.f32.mrf.mxu0
    %1909 = vdwg.mxu0
    %1910 = vmatpush.bf16.msra.mxu0 %v1358
    %1911 = vmatpush.bf16.msra.mxu0 %v1351
    %1912 = vmatpush.bf16.msra.mxu0 %v1344
    %1913 = vmatpush.bf16.msra.mxu0 %v1337
    %1914 = vmatpush.bf16.msra.mxu0 %v1330
    %1915 = vmatpush.bf16.msra.mxu0 %v1323
    %1916 = vmatpush.bf16.msra.mxu0 %v1316
    %1917 = vmatpush.bf16.msra.mxu0 %v1309
    %1918 = vmatmul.bf16.gmra.mxu0 %v326
    %v1919 = vpop.f32.mrf.mxu0
    %v1920 = vadd.f32 %v591, %v1919
    %v1921 = vpop.f32.mrf.mxu0
    %1922 = vdwg.mxu0
    %1923 = vmatpush.bf16.msra.mxu0 %v1414
    %1924 = vmatpush.bf16.msra.mxu0 %v1407
    %1925 = vmatpush.bf16.msra.mxu0 %v1400
    %1926 = vmatpush.bf16.msra.mxu0 %v1393
    %1927 = vmatpush.bf16.msra.mxu0 %v1386
    %1928 = vmatpush.bf16.msra.mxu0 %v1379
    %1929 = vmatpush.bf16.msra.mxu0 %v1372
    %1930 = vmatpush.bf16.msra.mxu0 %v1365
    %1931 = vmatmul.bf16.gmra.mxu0 %v327
    %v1932 = vpop.f32.mrf.mxu0
    %v1933 = vadd.f32 %v1920, %v1932
    %v1934 = vpop.f32.mrf.mxu0
    %1935 = vdwg.mxu0
    %1936 = vmatpush.bf16.msra.mxu0 %v1470
    %1937 = vmatpush.bf16.msra.mxu0 %v1463
    %1938 = vmatpush.bf16.msra.mxu0 %v1456
    %1939 = vmatpush.bf16.msra.mxu0 %v1449
    %1940 = vmatpush.bf16.msra.mxu0 %v1442
    %1941 = vmatpush.bf16.msra.mxu0 %v1435
    %1942 = vmatpush.bf16.msra.mxu0 %v1428
    %1943 = vmatpush.bf16.msra.mxu0 %v1421
    %1944 = vmatmul.bf16.gmra.mxu0 %v328
    %v1945 = vpop.f32.mrf.mxu0
    %v1946 = vadd.f32 %v1933, %v1945
    %v1947 = vpop.f32.mrf.mxu0
    %1948 = vdwg.mxu0
    %1949 = vmatpush.bf16.msra.mxu0 %v1526
    %1950 = vmatpush.bf16.msra.mxu0 %v1519
    %1951 = vmatpush.bf16.msra.mxu0 %v1512
    %1952 = vmatpush.bf16.msra.mxu0 %v1505
    %1953 = vmatpush.bf16.msra.mxu0 %v1498
    %1954 = vmatpush.bf16.msra.mxu0 %v1491
    %1955 = vmatpush.bf16.msra.mxu0 %v1484
    %1956 = vmatpush.bf16.msra.mxu0 %v1477
    %1957 = vmatmul.bf16.gmra.mxu0 %v329
    %v1958 = vpop.f32.mrf.mxu0
    %v1959 = vadd.f32 %v1946, %v1958
    %v1960 = vpop.f32.mrf.mxu0
    %1961 = vdwg.mxu0
    %1962 = vmatpush.bf16.msra.mxu0 %v1359
    %1963 = vmatpush.bf16.msra.mxu0 %v1352
    %1964 = vmatpush.bf16.msra.mxu0 %v1345
    %1965 = vmatpush.bf16.msra.mxu0 %v1338
    %1966 = vmatpush.bf16.msra.mxu0 %v1331
    %1967 = vmatpush.bf16.msra.mxu0 %v1324
    %1968 = vmatpush.bf16.msra.mxu0 %v1317
    %1969 = vmatpush.bf16.msra.mxu0 %v1310
    %1970 = vmatmul.bf16.gmra.mxu0 %v326
    %v1971 = vpop.f32.mrf.mxu0
    %v1972 = vadd.f32 %v592, %v1971
    %v1973 = vpop.f32.mrf.mxu0
    %1974 = vdwg.mxu0
    %1975 = vmatpush.bf16.msra.mxu0 %v1415
    %1976 = vmatpush.bf16.msra.mxu0 %v1408
    %1977 = vmatpush.bf16.msra.mxu0 %v1401
    %1978 = vmatpush.bf16.msra.mxu0 %v1394
    %1979 = vmatpush.bf16.msra.mxu0 %v1387
    %1980 = vmatpush.bf16.msra.mxu0 %v1380
    %1981 = vmatpush.bf16.msra.mxu0 %v1373
    %1982 = vmatpush.bf16.msra.mxu0 %v1366
    %1983 = vmatmul.bf16.gmra.mxu0 %v327
    %v1984 = vpop.f32.mrf.mxu0
    %v1985 = vadd.f32 %v1972, %v1984
    %v1986 = vpop.f32.mrf.mxu0
    %1987 = vdwg.mxu0
    %1988 = vmatpush.bf16.msra.mxu0 %v1471
    %1989 = vmatpush.bf16.msra.mxu0 %v1464
    %1990 = vmatpush.bf16.msra.mxu0 %v1457
    %1991 = vmatpush.bf16.msra.mxu0 %v1450
    %1992 = vmatpush.bf16.msra.mxu0 %v1443
    %1993 = vmatpush.bf16.msra.mxu0 %v1436
    %1994 = vmatpush.bf16.msra.mxu0 %v1429
    %1995 = vmatpush.bf16.msra.mxu0 %v1422
    %1996 = vmatmul.bf16.gmra.mxu0 %v328
    %v1997 = vpop.f32.mrf.mxu0
    %v1998 = vadd.f32 %v1985, %v1997
    %v1999 = vpop.f32.mrf.mxu0
    %2000 = vdwg.mxu0
    %2001 = vmatpush.bf16.msra.mxu0 %v1527
    %2002 = vmatpush.bf16.msra.mxu0 %v1520
    %2003 = vmatpush.bf16.msra.mxu0 %v1513
    %2004 = vmatpush.bf16.msra.mxu0 %v1506
    %2005 = vmatpush.bf16.msra.mxu0 %v1499
    %2006 = vmatpush.bf16.msra.mxu0 %v1492
    %2007 = vmatpush.bf16.msra.mxu0 %v1485
    %2008 = vmatpush.bf16.msra.mxu0 %v1478
    %2009 = vmatmul.bf16.gmra.mxu0 %v329
    %v2010 = vpop.f32.mrf.mxu0
    %v2011 = vadd.f32 %v1998, %v2010
    %v2012 = vpop.f32.mrf.mxu0
    %2013 = vdwg.mxu0
    %2014 = vmatpush.bf16.msra.mxu0 %v1360
    %2015 = vmatpush.bf16.msra.mxu0 %v1353
    %2016 = vmatpush.bf16.msra.mxu0 %v1346
    %2017 = vmatpush.bf16.msra.mxu0 %v1339
    %2018 = vmatpush.bf16.msra.mxu0 %v1332
    %2019 = vmatpush.bf16.msra.mxu0 %v1325
    %2020 = vmatpush.bf16.msra.mxu0 %v1318
    %2021 = vmatpush.bf16.msra.mxu0 %v1311
    %2022 = vmatmul.bf16.gmra.mxu0 %v326
    %v2023 = vpop.f32.mrf.mxu0
    %v2024 = vadd.f32 %v593, %v2023
    %v2025 = vpop.f32.mrf.mxu0
    %2026 = vdwg.mxu0
    %2027 = vmatpush.bf16.msra.mxu0 %v1416
    %2028 = vmatpush.bf16.msra.mxu0 %v1409
    %2029 = vmatpush.bf16.msra.mxu0 %v1402
    %2030 = vmatpush.bf16.msra.mxu0 %v1395
    %2031 = vmatpush.bf16.msra.mxu0 %v1388
    %2032 = vmatpush.bf16.msra.mxu0 %v1381
    %2033 = vmatpush.bf16.msra.mxu0 %v1374
    %2034 = vmatpush.bf16.msra.mxu0 %v1367
    %2035 = vmatmul.bf16.gmra.mxu0 %v327
    %v2036 = vpop.f32.mrf.mxu0
    %v2037 = vadd.f32 %v2024, %v2036
    %v2038 = vpop.f32.mrf.mxu0
    %2039 = vdwg.mxu0
    %2040 = vmatpush.bf16.msra.mxu0 %v1472
    %2041 = vmatpush.bf16.msra.mxu0 %v1465
    %2042 = vmatpush.bf16.msra.mxu0 %v1458
    %2043 = vmatpush.bf16.msra.mxu0 %v1451
    %2044 = vmatpush.bf16.msra.mxu0 %v1444
    %2045 = vmatpush.bf16.msra.mxu0 %v1437
    %2046 = vmatpush.bf16.msra.mxu0 %v1430
    %2047 = vmatpush.bf16.msra.mxu0 %v1423
    %2048 = vmatmul.bf16.gmra.mxu0 %v328
    %v2049 = vpop.f32.mrf.mxu0
    %v2050 = vadd.f32 %v2037, %v2049
    %v2051 = vpop.f32.mrf.mxu0
    %2052 = vdwg.mxu0
    %2053 = vmatpush.bf16.msra.mxu0 %v1528
    %2054 = vmatpush.bf16.msra.mxu0 %v1521
    %2055 = vmatpush.bf16.msra.mxu0 %v1514
    %2056 = vmatpush.bf16.msra.mxu0 %v1507
    %2057 = vmatpush.bf16.msra.mxu0 %v1500
    %2058 = vmatpush.bf16.msra.mxu0 %v1493
    %2059 = vmatpush.bf16.msra.mxu0 %v1486
    %2060 = vmatpush.bf16.msra.mxu0 %v1479
    %2061 = vmatmul.bf16.gmra.mxu0 %v329
    %v2062 = vpop.f32.mrf.mxu0
    %v2063 = vadd.f32 %v2050, %v2062
    %v2064 = vpop.f32.mrf.mxu0
    %2065 = vdwg.mxu0
    %2066 = vmatpush.bf16.msra.mxu0 %v1361
    %2067 = vmatpush.bf16.msra.mxu0 %v1354
    %2068 = vmatpush.bf16.msra.mxu0 %v1347
    %2069 = vmatpush.bf16.msra.mxu0 %v1340
    %2070 = vmatpush.bf16.msra.mxu0 %v1333
    %2071 = vmatpush.bf16.msra.mxu0 %v1326
    %2072 = vmatpush.bf16.msra.mxu0 %v1319
    %2073 = vmatpush.bf16.msra.mxu0 %v1312
    %2074 = vmatmul.bf16.gmra.mxu0 %v326
    %v2075 = vpop.f32.mrf.mxu0
    %v2076 = vadd.f32 %v594, %v2075
    %v2077 = vpop.f32.mrf.mxu0
    %2078 = vdwg.mxu0
    %2079 = vmatpush.bf16.msra.mxu0 %v1417
    %2080 = vmatpush.bf16.msra.mxu0 %v1410
    %2081 = vmatpush.bf16.msra.mxu0 %v1403
    %2082 = vmatpush.bf16.msra.mxu0 %v1396
    %2083 = vmatpush.bf16.msra.mxu0 %v1389
    %2084 = vmatpush.bf16.msra.mxu0 %v1382
    %2085 = vmatpush.bf16.msra.mxu0 %v1375
    %2086 = vmatpush.bf16.msra.mxu0 %v1368
    %2087 = vmatmul.bf16.gmra.mxu0 %v327
    %v2088 = vpop.f32.mrf.mxu0
    %v2089 = vadd.f32 %v2076, %v2088
    %v2090 = vpop.f32.mrf.mxu0
    %2091 = vdwg.mxu0
    %2092 = vmatpush.bf16.msra.mxu0 %v1473
    %2093 = vmatpush.bf16.msra.mxu0 %v1466
    %2094 = vmatpush.bf16.msra.mxu0 %v1459
    %2095 = vmatpush.bf16.msra.mxu0 %v1452
    %2096 = vmatpush.bf16.msra.mxu0 %v1445
    %2097 = vmatpush.bf16.msra.mxu0 %v1438
    %2098 = vmatpush.bf16.msra.mxu0 %v1431
    %2099 = vmatpush.bf16.msra.mxu0 %v1424
    %2100 = vmatmul.bf16.gmra.mxu0 %v328
    %v2101 = vpop.f32.mrf.mxu0
    %v2102 = vadd.f32 %v2089, %v2101
    %v2103 = vpop.f32.mrf.mxu0
    %2104 = vdwg.mxu0
    %2105 = vmatpush.bf16.msra.mxu0 %v1529
    %2106 = vmatpush.bf16.msra.mxu0 %v1522
    %2107 = vmatpush.bf16.msra.mxu0 %v1515
    %2108 = vmatpush.bf16.msra.mxu0 %v1508
    %2109 = vmatpush.bf16.msra.mxu0 %v1501
    %2110 = vmatpush.bf16.msra.mxu0 %v1494
    %2111 = vmatpush.bf16.msra.mxu0 %v1487
    %2112 = vmatpush.bf16.msra.mxu0 %v1480
    %2113 = vmatmul.bf16.gmra.mxu0 %v329
    %v2114 = vpop.f32.mrf.mxu0
    %v2115 = vadd.f32 %v2102, %v2114
    %v2116 = vpop.f32.mrf.mxu0
    %2117 = vdwg.mxu0
    %v2118 = vxor.u32 %v1803, 2147483648
    %v2119 = vxor.u32 %v1855, 2147483648
    %v2120 = vxor.u32 %v1907, 2147483648
    %v2121 = vxor.u32 %v1959, 2147483648
    %v2122 = vxor.u32 %v2011, 2147483648
    %v2123 = vxor.u32 %v2063, 2147483648
    %v2124 = vxor.u32 %v2115, 2147483648
    %v2125 = vmul.f32 %v2118, 1.442695
    %v2126 = vpow.pop %v2125
    %v2127 = vmul.f32 %v2119, 1.442695
    %v2128 = vpow.pop %v2127
    %v2129 = vmul.f32 %v2120, 1.442695
    %v2130 = vpow.pop %v2129
    %v2131 = vmul.f32 %v2121, 1.442695
    %v2132 = vpow.pop %v2131
    %v2133 = vmul.f32 %v2122, 1.442695
    %v2134 = vpow.pop %v2133
    %v2135 = vmul.f32 %v2123, 1.442695
    %v2136 = vpow.pop %v2135
    %v2137 = vmul.f32 %v2124, 1.442695
    %v2138 = vpow.pop %v2137
    %v2139 = vadd.f32 %v2126, 1.0
    %v2140 = vadd.f32 %v2128, 1.0
    %v2141 = vadd.f32 %v2130, 1.0
    %v2142 = vadd.f32 %v2132, 1.0
    %v2143 = vadd.f32 %v2134, 1.0
    %v2144 = vadd.f32 %v2136, 1.0
    %v2145 = vadd.f32 %v2138, 1.0
    %v2146 = vrcp.pop %v2139
    %v2147 = vmul.f32 %v2139, %v2146
    %v2148 = vsub.f32 1.0, %v2147
    %v2149 = vmul.f32 %v2146, %v2148
    %v2150 = vadd.f32 %v2146, %v2149
    %vm2151 = vweird.f32 %v2139
    %vm2152 = vweird.f32 %v2146
    %vm2153 = vmor %vm2151, %vm2152
    %v2154 = vsel %vm2153, %v2146, %v2150
    %v2155 = vand.u32 2147483647, %v2139
    %vm2156 = vcmp.eq.f32.partialorder %v2155, 8.507059e+37
    %v2157 = vand.u32 %v2139, 2147483648
    %v2158 = vor.u32 1.1754944e-38, %v2157
    %v2159 = vsel %vm2156, %v2158, %v2154
    %v2160 = vmul.f32 1.0, %v2159
    %v2161 = vrcp.pop %v2140
    %v2162 = vmul.f32 %v2140, %v2161
    %v2163 = vsub.f32 1.0, %v2162
    %v2164 = vmul.f32 %v2161, %v2163
    %v2165 = vadd.f32 %v2161, %v2164
    %vm2166 = vweird.f32 %v2140
    %vm2167 = vweird.f32 %v2161
    %vm2168 = vmor %vm2166, %vm2167
    %v2169 = vsel %vm2168, %v2161, %v2165
    %v2170 = vand.u32 2147483647, %v2140
    %vm2171 = vcmp.eq.f32.partialorder %v2170, 8.507059e+37
    %v2172 = vand.u32 %v2140, 2147483648
    %v2173 = vor.u32 1.1754944e-38, %v2172
    %v2174 = vsel %vm2171, %v2173, %v2169
    %v2175 = vmul.f32 1.0, %v2174
    %v2176 = vrcp.pop %v2141
    %v2177 = vmul.f32 %v2141, %v2176
    %v2178 = vsub.f32 1.0, %v2177
    %v2179 = vmul.f32 %v2176, %v2178
    %v2180 = vadd.f32 %v2176, %v2179
    %vm2181 = vweird.f32 %v2141
    %vm2182 = vweird.f32 %v2176
    %vm2183 = vmor %vm2181, %vm2182
    %v2184 = vsel %vm2183, %v2176, %v2180
    %v2185 = vand.u32 2147483647, %v2141
    %vm2186 = vcmp.eq.f32.partialorder %v2185, 8.507059e+37
    %v2187 = vand.u32 %v2141, 2147483648
    %v2188 = vor.u32 1.1754944e-38, %v2187
    %v2189 = vsel %vm2186, %v2188, %v2184
    %v2190 = vmul.f32 1.0, %v2189
    %v2191 = vrcp.pop %v2142
    %v2192 = vmul.f32 %v2142, %v2191
    %v2193 = vsub.f32 1.0, %v2192
    %v2194 = vmul.f32 %v2191, %v2193
    %v2195 = vadd.f32 %v2191, %v2194
    %vm2196 = vweird.f32 %v2142
    %vm2197 = vweird.f32 %v2191
    %vm2198 = vmor %vm2196, %vm2197
    %v2199 = vsel %vm2198, %v2191, %v2195
    %v2200 = vand.u32 2147483647, %v2142
    %vm2201 = vcmp.eq.f32.partialorder %v2200, 8.507059e+37
    %v2202 = vand.u32 %v2142, 2147483648
    %v2203 = vor.u32 1.1754944e-38, %v2202
    %v2204 = vsel %vm2201, %v2203, %v2199
    %v2205 = vmul.f32 1.0, %v2204
    %v2206 = vrcp.pop %v2143
    %v2207 = vmul.f32 %v2143, %v2206
    %v2208 = vsub.f32 1.0, %v2207
    %v2209 = vmul.f32 %v2206, %v2208
    %v2210 = vadd.f32 %v2206, %v2209
    %vm2211 = vweird.f32 %v2143
    %vm2212 = vweird.f32 %v2206
    %vm2213 = vmor %vm2211, %vm2212
    %v2214 = vsel %vm2213, %v2206, %v2210
    %v2215 = vand.u32 2147483647, %v2143
    %vm2216 = vcmp.eq.f32.partialorder %v2215, 8.507059e+37
    %v2217 = vand.u32 %v2143, 2147483648
    %v2218 = vor.u32 1.1754944e-38, %v2217
    %v2219 = vsel %vm2216, %v2218, %v2214
    %v2220 = vmul.f32 1.0, %v2219
    %v2221 = vrcp.pop %v2144
    %v2222 = vmul.f32 %v2144, %v2221
    %v2223 = vsub.f32 1.0, %v2222
    %v2224 = vmul.f32 %v2221, %v2223
    %v2225 = vadd.f32 %v2221, %v2224
    %vm2226 = vweird.f32 %v2144
    %vm2227 = vweird.f32 %v2221
    %vm2228 = vmor %vm2226, %vm2227
    %v2229 = vsel %vm2228, %v2221, %v2225
    %v2230 = vand.u32 2147483647, %v2144
    %vm2231 = vcmp.eq.f32.partialorder %v2230, 8.507059e+37
    %v2232 = vand.u32 %v2144, 2147483648
    %v2233 = vor.u32 1.1754944e-38, %v2232
    %v2234 = vsel %vm2231, %v2233, %v2229
    %v2235 = vmul.f32 1.0, %v2234
    %v2236 = vrcp.pop %v2145
    %v2237 = vmul.f32 %v2145, %v2236
    %v2238 = vsub.f32 1.0, %v2237
    %v2239 = vmul.f32 %v2236, %v2238
    %v2240 = vadd.f32 %v2236, %v2239
    %vm2241 = vweird.f32 %v2145
    %vm2242 = vweird.f32 %v2236
    %vm2243 = vmor %vm2241, %vm2242
    %v2244 = vsel %vm2243, %v2236, %v2240
    %v2245 = vand.u32 2147483647, %v2145
    %vm2246 = vcmp.eq.f32.partialorder %v2245, 8.507059e+37
    %v2247 = vand.u32 %v2145, 2147483648
    %v2248 = vor.u32 1.1754944e-38, %v2247
    %v2249 = vsel %vm2246, %v2248, %v2244
    %v2250 = vmul.f32 1.0, %v2249
    %2251 = vst [vmem:[#allocation10] sm:$0xff] %v2160
    %2252 = vst [vmem:[#allocation10 + $0x8] sm:$0xff] %v2175
    %2253 = vst [vmem:[#allocation10 + $0x10] sm:$0xff] %v2190
    %2254 = vst [vmem:[#allocation10 + $0x18] sm:$0xff] %v2205
    %2255 = vst [vmem:[#allocation10 + $0x20] sm:$0xff] %v2220
    %2256 = vst [vmem:[#allocation10 + $0x28] sm:$0xff] %v2235
    %2257 = vst [vmem:[#allocation10 + $0x30] sm:$0xff] %v2250
    // Predicated region
    $region34: #{tpu_custom_call.1} parent=1 // pred_check
      _
    $region35: #{tpu_custom_call.1} parent=1 // pred_check_branch
      %2259 = sbr.rel (0) target = $region37
    $region36: #{tpu_custom_call.1} parent=1 // pred_region
      %2261 = vsyncadd [#allocation4], 0
      %s2263 = sshll.u32 [#allocation10], 4
      %s2264 = int_to_ptr.vmem [resolvable:$true] %s2263
      %s2265 = sshll.u32 %s4, 4
      %s2266 = int_to_ptr.hbm [resolvable:$true] %s2265
      %2268 = dma.vmem_to_hbm [thread:$0]  %s2264, 896, %s2266, [#allocation4]
    $region37: #{tpu_custom_call.1} parent=1 // pred_fallthru
      _
    // Predicated region
    $region38: #{tpu_custom_call.1} parent=1 // pred_check
      _
    $region39: #{tpu_custom_call.1} parent=1 // pred_check_branch
      %2270 = sbr.rel (0) target = $region41
    $region40: #{tpu_custom_call.1} parent=1 // pred_region
      %2272 = dma.done [#allocation4], 896
    $region41: #{tpu_custom_call.1} parent=1 // pred_fallthru
      _
    %2273 = vsyncpa [#allocation3], 1
    %2274 = vsyncpa [#allocation6], 1
    %2275 = vsyncpa [#allocation9], 1
    %2276 = vsyncpa [#allocation4], 1

</llo_original>
